<compile_context>
chip_gen: v6e
topology: v6e:2x2x1
jax: 0.10.0
libtpu: 0.0.40
codegen_flags: <defaults>
</compile_context>

<pallas_src>
import functools

import jax
import jax.numpy as jnp
from jax import lax
from jax.experimental import pallas as pl
from jax.experimental.pallas import tpu as pltpu


def _sigmoid_eup(x):
    # sigmoid(x) == 0.5 * (tanh(0.5 * x) + 1): a single EUP transcendental per
    # element (instead of a possible exp + reciprocal pair), so the three
    # sigmoids per step don't saturate the single EUP slot.
    return 0.5 * jnp.tanh(0.5 * x) + 0.5


def _lstm_recurrent_kernel(gx_ref, whh_ref,
                           out_ref, h_out_ref, c_out_ref,
                           h_sc, c_sc, out_sc,
                           *, seq_len, need_mask, unroll):
    """Recurrent part only: gates = G_x[t] + h_prev @ W_hh^T (bias is in G_x).

    Grid = (batch_tiles, time_chunks).  The time axis MUST stay the last
    (fastest-varying, "arbitrary") grid dimension: the h/c state carried in
    VMEM scratch is only valid when all time chunks of one batch tile run
    back-to-back, in order.
    """
    t_idx = pl.program_id(1)                  # time-chunk index ("arbitrary")
    t_chunk = gx_ref.shape[0]                 # static block extent
    hidden = whh_ref.shape[0]                 # H

    # New batch tile -> reset the carried state.
    @pl.when(t_idx == 0)
    def _():
        h_sc[...] = jnp.zeros_like(h_sc)
        c_sc[...] = jnp.zeros_like(c_sc)

    whh = whh_ref[...]                        # resident (H, 4H), bf16 or f32

    def step(s, carry):
        h, c = carry                          # f32 (batch_tile, H)
        # gx_ref[s]: (batch_tile, 4H), already x@W_ih^T + b_ih + b_hh.
        gates = gx_ref[s].astype(jnp.float32) + jnp.dot(
            h.astype(whh.dtype), whh, preferred_element_type=jnp.float32)
        # PyTorch gate order [i, f, g, o]; slices are lane-aligned when H%128==0.
        i_g = _sigmoid_eup(gates[:, 0 * hidden:1 * hidden])
        f_g = _sigmoid_eup(gates[:, 1 * hidden:2 * hidden])
        g_g = jnp.tanh(gates[:, 2 * hidden:3 * hidden])
        o_g = _sigmoid_eup(gates[:, 3 * hidden:4 * hidden])
        c_new = f_g * c + i_g * g_g           # f32 state update (VPU)
        h_new = o_g * jnp.tanh(c_new)
        if need_mask:
            # Timesteps past the true sequence length (time axis was padded up
            # to a multiple of t_chunk) must not advance the state.
            m = ((t_idx * t_chunk + s) < seq_len).astype(jnp.float32)
            h_new = m * h_new + (1.0 - m) * h
            c_new = m * c_new + (1.0 - m) * c
        out_sc[s] = h_new                     # contiguous (batch_tile, H) store
        return h_new, c_new

    h, c = lax.fori_loop(0, t_chunk, step, (h_sc[...], c_sc[...]), unroll=unroll)

    # Persist state across time-chunks (once per chunk, not per step).
    h_sc[...] = h
    c_sc[...] = c

    # One in-VMEM swizzle (time-major -> batch-major) so the HBM output is
    # written batch_first directly; no post-kernel XLA transpose.
    out_ref[...] = jnp.transpose(out_sc[...], (1, 0, 2)).astype(out_ref.dtype)

    # Final (h, c) written only on the last time-chunk of this batch tile.
    @pl.when(t_idx == pl.num_programs(1) - 1)
    def _():
        h_out_ref[...] = h.astype(h_out_ref.dtype)
        c_out_ref[...] = c.astype(c_out_ref.dtype)


def _round_down_mult(x, m):
    return max(m, (x // m) * m)


def _plan_time_tiling(T, requested, batch_tile, gate_width, gx_bytes,
                      target_block_bytes):
    """Pick (t_chunk, T_pad).

    Constraints: t_chunk == T_pad (single chunk) or t_chunk % 8 == 0 so the
    batch-major output block (batch_tile, t_chunk, H) satisfies the (8, 128)
    tiling rule, and T_pad % t_chunk == 0.  Never degrades to t_chunk=1: for
    awkward T the time axis is padded and masked in-kernel.
    """
    if requested is None:
        per_step = max(1, batch_tile * gate_width * gx_bytes)
        requested = _round_down_mult(min(128, target_block_bytes // per_step), 8)
    requested = max(1, min(int(requested), T))
    if T <= requested:
        return T, T                            # single chunk: block dim == full dim
    divs = [d for d in range(8, T + 1, 8) if T % d == 0]
    le = [d for d in divs if d <= requested]
    if le:
        return le[-1], T
    ge = [d for d in divs if requested <= d <= 4 * requested]
    if ge:
        return ge[0], T
    # No friendly divisor (odd / prime T): pad the time axis, mask in-kernel.
    t_chunk = _round_down_mult(requested, 8)
    t_pad = ((T + t_chunk - 1) // t_chunk) * t_chunk
    return t_chunk, t_pad


def _vmem_footprint_bytes(t_chunk, batch_tile, H, gx_bytes, w_bytes, out_bytes,
                          whh_buffers):
    G = 4 * H
    gx_buf = 2 * t_chunk * batch_tile * G * gx_bytes       # gx, double-buffered
    out_buf = 2 * batch_tile * t_chunk * H * out_bytes     # output, double-buffered
    whh_buf = whh_buffers * H * G * w_bytes                # resident weight
    hc_buf = 2 * 2 * batch_tile * H * out_bytes            # final h and c
    scratch = (2 * batch_tile * H + t_chunk * batch_tile * H) * 4
    return gx_buf + out_buf + whh_buf + hc_buf + scratch


def lstm_encoder_forward(x, w_ih, w_hh, b_ih, b_hh, *,
                         t_chunk=None, batch_tile=None, unroll=None,
                         compute_dtype=jnp.bfloat16, gx_dtype=None):
    """x: (B, T, D). Returns (output (B,T,H), (h (1,B,H), c (1,B,H))).

    Matches torch.nn.LSTM(D, H, num_layers=1, bidirectional=False,
    batch_first=True) with zero initial state.
    """
    # TODO(synk): pack_padded_sequence / pad_packed_sequence (seq_length path)
    # is not implemented; this corresponds to forward(input, seq_length=None).
    B, T, D = x.shape
    H = w_ih.shape[0] // 4
    G = 4 * H
    if gx_dtype is None:
        gx_dtype = compute_dtype
    gx_bytes = jnp.dtype(gx_dtype).itemsize
    w_bytes = jnp.dtype(compute_dtype).itemsize
    out_bytes = jnp.dtype(x.dtype).itemsize

    # ---- batch tile --------------------------------------------------------
    # Only split the batch when each tile still fills MXU rows; batch axis is
    # marked "parallel" (megacore / v7x second TensorCore).
    if (batch_tile is None or batch_tile <= 0 or B % batch_tile != 0
            or (batch_tile != B and batch_tile % 8 != 0)):
        batch_tile = B
    # TODO(synk): pad H to a multiple of 128 for non-lane-aligned hidden sizes
    # (the module default H=512 is already aligned); gate slices remain correct
    # for unaligned H, just less efficient.

    # ---- VMEM-aware time tiling --------------------------------------------
    try:
        hw_vmem = int(getattr(pltpu.get_tpu_info(), "vmem_capacity_bytes",
                              64 * 1024 * 1024))
    except Exception:                          # conservative fallback (v7x-sized)
        hw_vmem = 64 * 1024 * 1024
    budget = (hw_vmem * 3) // 4
    whh_buffers = 1                            # W_hh single-buffered (resident)

    target = 4 << 20                           # ~4 MiB gx block per buffer
    requested = t_chunk
    while True:
        tc, T_pad = _plan_time_tiling(T, requested, batch_tile, G, gx_bytes,
                                      target)
        fp = _vmem_footprint_bytes(tc, batch_tile, H, gx_bytes, w_bytes,
                                   out_bytes, whh_buffers)
        if fp <= budget or target <= (256 << 10):
            break
        target //= 2
        requested = None                       # let the planner shrink the chunk
    t_chunk = tc
    need_mask = T_pad != T
    nb, nt = B // batch_tile, T_pad // t_chunk
    vmem_limit = int(min(128 * 1024 * 1024,
                         max(32 * 1024 * 1024, (fp * 5) // 4)))

    if unroll is None:
        # Full unroll only while the per-step live set (a (batch_tile, 4H) f32
        # gates tile + gate slices) stays modest; otherwise partial unroll to
        # limit vreg spill traffic.
        unroll = True if batch_tile * G <= 64 * 1024 else 2

    # ---- hoisted input projection: ONE big GEMM ----------------------------
    # x is transposed to time-major first (a pass over the *narrow* input,
    # D << 4H), so the big GEMM writes gx directly in the (T, B, 4H) layout the
    # kernel streams — the wide gx stream itself is never transposed.
    wih_t = jnp.transpose(w_ih).astype(compute_dtype)          # (D, 4H)
    whh_t = jnp.transpose(w_hh).astype(compute_dtype)          # (H, 4H)
    bias = (b_ih + b_hh).astype(jnp.float32)                   # (4H,)
    x_tm = jnp.transpose(x, (1, 0, 2)).astype(compute_dtype)   # (T, B, D)
    if T_pad != T:
        x_tm = jnp.pad(x_tm, ((0, T_pad - T), (0, 0), (0, 0)))
    gx = jnp.einsum("tbd,dg->tbg", x_tm, wih_t,
                    preferred_element_type=jnp.float32) + bias
    gx = gx.astype(gx_dtype)                  # bf16 halves the dominant HBM stream

    # Single-buffer the never-changing recurrent weight (constant index_map).
    whh_idx = lambda b, t: (0, 0)
    try:
        whh_spec = pl.BlockSpec((H, G), whh_idx, pipeline_mode=pl.Buffered(1))
    except Exception:                          # older Pallas without pipeline_mode
        whh_spec = pl.BlockSpec((H, G), whh_idx)

    kernel = functools.partial(_lstm_recurrent_kernel, seq_len=T,
                               need_mask=need_mask, unroll=unroll)

    out_full, h_last, c_last = pl.pallas_call(
        kernel,
        out_shape=(
            jax.ShapeDtypeStruct((B, T_pad, H), x.dtype),   # batch_first output
            jax.ShapeDtypeStruct((B, H), x.dtype),          # final h
            jax.ShapeDtypeStruct((B, H), x.dtype),          # final c
        ),
        grid_spec=pltpu.PrefetchScalarGridSpec(
            num_scalar_prefetch=0,
            # NOTE: time must stay the LAST grid axis (sequential recurrence,
            # carried VMEM state); batch tiles are independent.
            grid=(nb, nt),
            in_specs=[
                # precomputed gates, time-major, chunked over time & batch tile
                pl.BlockSpec((t_chunk, batch_tile, G), lambda b, t: (t, b, 0)),
                whh_spec,
            ],
            out_specs=[
                # batch-major output block: no post-kernel HBM transpose
                pl.BlockSpec((batch_tile, t_chunk, H), lambda b, t: (b, t, 0)),
                pl.BlockSpec((batch_tile, H), lambda b, t: (b, 0)),   # final h
                pl.BlockSpec((batch_tile, H), lambda b, t: (b, 0)),   # final c
            ],
            scratch_shapes=[
                pltpu.VMEM((batch_tile, H), jnp.float32),             # h state
                pltpu.VMEM((batch_tile, H), jnp.float32),             # c state
                pltpu.VMEM((t_chunk, batch_tile, H), jnp.float32),    # chunk out
            ],
        ),
        compiler_params=pltpu.CompilerParams(
            dimension_semantics=("parallel", "arbitrary"),
            vmem_limit_bytes=vmem_limit,
        ),
    )(gx, whh_t)

    output = out_full[:, :T, :] if T_pad != T else out_full
    h = h_last.reshape(1, B, H)                      # (num_layers=1, B, H)
    c = c_last.reshape(1, B, H)
    return output, (h, c)


def _lstm_reference(x, w_ih, w_hh, b_ih, b_hh):
    """Pure-JAX reference matching PyTorch nn.LSTM (1 layer, unidirectional)."""
    B, T, D = x.shape
    H = w_hh.shape[1]
    bias = b_ih + b_hh

    def step(carry, x_t):
        h, c = carry
        gates = x_t @ w_ih.T + h @ w_hh.T + bias
        i = jax.nn.sigmoid(gates[:, 0 * H:1 * H])
        f = jax.nn.sigmoid(gates[:, 1 * H:2 * H])
        g = jnp.tanh(gates[:, 2 * H:3 * H])
        o = jax.nn.sigmoid(gates[:, 3 * H:4 * H])
        c_new = f * c + i * g
        h_new = o * jnp.tanh(c_new)
        return (h_new, c_new), h_new

    h0 = jnp.zeros((B, H), x.dtype)
    c0 = jnp.zeros((B, H), x.dtype)
    (h, c), ys = lax.scan(step, (h0, c0), jnp.transpose(x, (1, 0, 2)))
    return jnp.transpose(ys, (1, 0, 2)), (h[None], c[None])


if __name__ == "__main__":
    # Small shapes: batch=2, seq=16, input_size=16, hidden_size=32, num_layers=1.
    B, T, D, H = 2, 16, 16, 32

    key = jax.random.PRNGKey(0)
    kx, k1, k2, k3, k4, kx2 = jax.random.split(key, 6)

    # Deterministic parameter init mirroring PyTorch's U(-1/sqrt(H), 1/sqrt(H)).
    bound = 1.0 / jnp.sqrt(jnp.float32(H))
    w_ih = jax.random.uniform(k1, (4 * H, D), jnp.float32, -bound, bound)
    w_hh = jax.random.uniform(k2, (4 * H, H), jnp.float32, -bound, bound)
    b_ih = jax.random.uniform(k3, (4 * H,), jnp.float32, -bound, bound)
    b_hh = jax.random.uniform(k4, (4 * H,), jnp.float32, -bound, bound)

    x = jax.random.normal(kx, (B, T, D), jnp.float32)
    ref_out, (ref_h, ref_c) = _lstm_reference(x, w_ih, w_hh, b_ih, b_hh)

    # 1) f32 everywhere, t_chunk=8 -> two time-chunks (exercises carried state).
    out, (h, c) = lstm_encoder_forward(
        x, w_ih, w_hh, b_ih, b_hh, t_chunk=8,
        compute_dtype=jnp.float32, gx_dtype=jnp.float32)
    jax.block_until_ready((out, h, c))
    assert out.shape == (B, T, H)
    assert h.shape == (1, B, H) and c.shape == (1, B, H)
    assert jnp.allclose(out, ref_out, atol=1e-4, rtol=1e-4)
    assert jnp.allclose(h, ref_h, atol=1e-4, rtol=1e-4)
    assert jnp.allclose(c, ref_c, atol=1e-4, rtol=1e-4)

    # 2) default path: bf16 weights + bf16 gx stream, f32 gate/state math.
    out_bf, (h_bf, c_bf) = lstm_encoder_forward(x, w_ih, w_hh, b_ih, b_hh)
    jax.block_until_ready((out_bf, h_bf, c_bf))
    assert jnp.allclose(out_bf, ref_out, atol=5e-2, rtol=5e-2)
    assert jnp.allclose(h_bf, ref_h, atol=5e-2, rtol=5e-2)
    assert jnp.allclose(c_bf, ref_c, atol=5e-2, rtol=5e-2)

    # 3) awkward T (no multiple-of-8 divisor): exercises padded + masked tail.
    T2 = 36
    x2 = jax.random.normal(kx2, (B, T2, D), jnp.float32)
    ref_out2, (ref_h2, ref_c2) = _lstm_reference(x2, w_ih, w_hh, b_ih, b_hh)
    out2, (h2, c2) = lstm_encoder_forward(
        x2, w_ih, w_hh, b_ih, b_hh, t_chunk=8,
        compute_dtype=jnp.float32, gx_dtype=jnp.float32)
    jax.block_until_ready((out2, h2, c2))
    assert out2.shape == (B, T2, H)
    assert jnp.allclose(out2, ref_out2, atol=1e-4, rtol=1e-4)
    assert jnp.allclose(h2, ref_h2, atol=1e-4, rtol=1e-4)
    assert jnp.allclose(c2, ref_c2, atol=1e-4, rtol=1e-4)

    print("KERNEL_OK")
</pallas_src>

<mosaic_0001>
module attributes {stable_mosaic.version = 11 : i64} {
  func.func @_lstm_recurrent_kernel(%arg0: i32, %arg1: i32, %arg2: memref<8x2x128xf32, #tpu.memory_space<vmem>>, %arg3: memref<32x128xf32, #tpu.memory_space<vmem>>, %arg4: memref<2x8x32xf32, #tpu.memory_space<vmem>>, %arg5: memref<2x32xf32, #tpu.memory_space<vmem>>, %arg6: memref<2x32xf32, #tpu.memory_space<vmem>>, %arg7: memref<2x32xf32, #tpu.memory_space<vmem>>, %arg8: memref<2x32xf32, #tpu.memory_space<vmem>>, %arg9: memref<8x2x32xf32, #tpu.memory_space<vmem>>) attributes {dimension_semantics = [#tpu.dimension_semantics<parallel>, #tpu.dimension_semantics<arbitrary>], iteration_bounds = array<i64: 1, 2>, scalar_prefetch = 0 : i64, scratch_operands = 3 : i64, tpu.core_type = #tpu.core_type<tc>, window_params = [{transform_indices = @transform_0, window_bounds = array<i64: 8, 2, 128>}, {pipeline_mode = #tpu.pipeline_mode<synchronous>, transform_indices = @transform_1, window_bounds = array<i64: 32, 128>}, {transform_indices = @transform_2, window_bounds = array<i64: 2, 8, 32>}, {transform_indices = @transform_3, window_bounds = array<i64: 2, 32>}, {transform_indices = @transform_4, window_bounds = array<i64: 2, 32>}]} {
    %c0_i32 = arith.constant 0 : i32
    %0 = arith.cmpi eq, %arg1, %c0_i32 : i32
    %1 = arith.extui %0 : i1 to i32
    %c0_i32_0 = arith.constant 0 : i32
    %2 = arith.cmpi ne, %1, %c0_i32_0 : i32
    scf.if %2 {
      %cst_130 = arith.constant 0.000000e+00 : f32
      %334 = vector.broadcast %cst_130 : f32 to vector<2x32xf32>
      %c0_131 = arith.constant 0 : index
      %c0_132 = arith.constant 0 : index
      %335 = vector.load %arg7[%c0_131, %c0_132] : memref<2x32xf32, #tpu.memory_space<vmem>>, vector<2x32xf32>
      tpu.vector_store %arg7[%c0_131, %c0_132], %334 {strides = array<i32>} : memref<2x32xf32, #tpu.memory_space<vmem>>, vector<2x32xf32>,
      %cst_133 = arith.constant 0.000000e+00 : f32
      %336 = vector.broadcast %cst_133 : f32 to vector<2x32xf32>
      %c0_134 = arith.constant 0 : index
      %c0_135 = arith.constant 0 : index
      %337 = vector.load %arg8[%c0_134, %c0_135] : memref<2x32xf32, #tpu.memory_space<vmem>>, vector<2x32xf32>
      tpu.vector_store %arg8[%c0_134, %c0_135], %336 {strides = array<i32>} : memref<2x32xf32, #tpu.memory_space<vmem>>, vector<2x32xf32>,
    } else {
    }
    %c0 = arith.constant 0 : index
    %c0_1 = arith.constant 0 : index
    %3 = vector.load %arg3[%c0, %c0_1] : memref<32x128xf32, #tpu.memory_space<vmem>>, vector<32x128xf32>
    %c0_2 = arith.constant 0 : index
    %c0_3 = arith.constant 0 : index
    %4 = vector.load %arg7[%c0_2, %c0_3] : memref<2x32xf32, #tpu.memory_space<vmem>>, vector<2x32xf32>
    %c0_4 = arith.constant 0 : index
    %c0_5 = arith.constant 0 : index
    %5 = vector.load %arg8[%c0_4, %c0_5] : memref<2x32xf32, #tpu.memory_space<vmem>>, vector<2x32xf32>
    %c0_i32_6 = arith.constant 0 : i32
    %6 = arith.index_cast %c0_i32_6 : i32 to index
    %c0_7 = arith.constant 0 : index
    %c0_8 = arith.constant 0 : index
    %7 = vector.load %arg2[%6, %c0_7, %c0_8] : memref<8x2x128xf32, #tpu.memory_space<vmem>>, vector<1x2x128xf32>
    %8 = vector.shape_cast %7 : vector<1x2x128xf32> to vector<2x128xf32>
    %cst = arith.constant dense<0.000000e+00> : vector<2x128xf32>
    %9 = tpu.matmul %4, %3, %cst {dimension_numbers = #tpu.dot_dimension_numbers<[1], [0], [0], [1], [0, 0, 1, 1], [], []>} : vector<2x32xf32>, vector<32x128xf32>, vector<2x128xf32> -> vector<2x128xf32>
    %10 = arith.addf %8, %9 : vector<2x128xf32>
    %11 = vector.extract_strided_slice %10 {offsets = [0, 0], sizes = [2, 32], strides = [1, 1]} : vector<2x128xf32> to vector<2x32xf32>
    %cst_9 = arith.constant 5.000000e-01 : f32
    %12 = vector.broadcast %cst_9 : f32 to vector<2x32xf32>
    %13 = arith.mulf %12, %11 : vector<2x32xf32>
    %14 = math.tanh %13 : vector<2x32xf32>
    %cst_10 = arith.constant 5.000000e-01 : f32
    %15 = vector.broadcast %cst_10 : f32 to vector<2x32xf32>
    %16 = arith.mulf %15, %14 : vector<2x32xf32>
    %cst_11 = arith.constant 5.000000e-01 : f32
    %17 = vector.broadcast %cst_11 : f32 to vector<2x32xf32>
    %18 = arith.addf %16, %17 : vector<2x32xf32>
    %19 = vector.extract_strided_slice %10 {offsets = [0, 32], sizes = [2, 32], strides = [1, 1]} : vector<2x128xf32> to vector<2x32xf32>
    %cst_12 = arith.constant 5.000000e-01 : f32
    %20 = vector.broadcast %cst_12 : f32 to vector<2x32xf32>
    %21 = arith.mulf %20, %19 : vector<2x32xf32>
    %22 = math.tanh %21 : vector<2x32xf32>
    %cst_13 = arith.constant 5.000000e-01 : f32
    %23 = vector.broadcast %cst_13 : f32 to vector<2x32xf32>
    %24 = arith.mulf %23, %22 : vector<2x32xf32>
    %cst_14 = arith.constant 5.000000e-01 : f32
    %25 = vector.broadcast %cst_14 : f32 to vector<2x32xf32>
    %26 = arith.addf %24, %25 : vector<2x32xf32>
    %27 = vector.extract_strided_slice %10 {offsets = [0, 64], sizes = [2, 32], strides = [1, 1]} : vector<2x128xf32> to vector<2x32xf32>
    %28 = math.tanh %27 : vector<2x32xf32>
    %29 = vector.extract_strided_slice %10 {offsets = [0, 96], sizes = [2, 32], strides = [1, 1]} : vector<2x128xf32> to vector<2x32xf32>
    %cst_15 = arith.constant 5.000000e-01 : f32
    %30 = vector.broadcast %cst_15 : f32 to vector<2x32xf32>
    %31 = arith.mulf %30, %29 : vector<2x32xf32>
    %32 = math.tanh %31 : vector<2x32xf32>
    %cst_16 = arith.constant 5.000000e-01 : f32
    %33 = vector.broadcast %cst_16 : f32 to vector<2x32xf32>
    %34 = arith.mulf %33, %32 : vector<2x32xf32>
    %cst_17 = arith.constant 5.000000e-01 : f32
    %35 = vector.broadcast %cst_17 : f32 to vector<2x32xf32>
    %36 = arith.addf %34, %35 : vector<2x32xf32>
    %37 = arith.mulf %26, %5 : vector<2x32xf32>
    %38 = arith.mulf %18, %28 : vector<2x32xf32>
    %39 = arith.addf %37, %38 : vector<2x32xf32>
    %40 = math.tanh %39 : vector<2x32xf32>
    %41 = arith.mulf %36, %40 : vector<2x32xf32>
    %42 = arith.index_cast %c0_i32_6 : i32 to index
    %c0_18 = arith.constant 0 : index
    %c0_19 = arith.constant 0 : index
    %43 = vector.load %arg9[%42, %c0_18, %c0_19] : memref<8x2x32xf32, #tpu.memory_space<vmem>>, vector<1x2x32xf32>
    %44 = vector.shape_cast %43 : vector<1x2x32xf32> to vector<2x32xf32>
    %45 = vector.shape_cast %41 : vector<2x32xf32> to vector<1x2x32xf32>
    tpu.vector_store %arg9[%42, %c0_18, %c0_19], %45 {strides = array<i32>} : memref<8x2x32xf32, #tpu.memory_space<vmem>>, vector<1x2x32xf32>,
    %c1_i32 = arith.constant 1 : i32
    %46 = arith.index_cast %c1_i32 : i32 to index
    %c0_20 = arith.constant 0 : index
    %c0_21 = arith.constant 0 : index
    %47 = vector.load %arg2[%46, %c0_20, %c0_21] : memref<8x2x128xf32, #tpu.memory_space<vmem>>, vector<1x2x128xf32>
    %48 = vector.shape_cast %47 : vector<1x2x128xf32> to vector<2x128xf32>
    %cst_22 = arith.constant dense<0.000000e+00> : vector<2x128xf32>
    %49 = tpu.matmul %41, %3, %cst_22 {dimension_numbers = #tpu.dot_dimension_numbers<[1], [0], [0], [1], [0, 0, 1, 1], [], []>} : vector<2x32xf32>, vector<32x128xf32>, vector<2x128xf32> -> vector<2x128xf32>
    %50 = arith.addf %48, %49 : vector<2x128xf32>
    %51 = vector.extract_strided_slice %50 {offsets = [0, 0], sizes = [2, 32], strides = [1, 1]} : vector<2x128xf32> to vector<2x32xf32>
    %cst_23 = arith.constant 5.000000e-01 : f32
    %52 = vector.broadcast %cst_23 : f32 to vector<2x32xf32>
    %53 = arith.mulf %52, %51 : vector<2x32xf32>
    %54 = math.tanh %53 : vector<2x32xf32>
    %cst_24 = arith.constant 5.000000e-01 : f32
    %55 = vector.broadcast %cst_24 : f32 to vector<2x32xf32>
    %56 = arith.mulf %55, %54 : vector<2x32xf32>
    %cst_25 = arith.constant 5.000000e-01 : f32
    %57 = vector.broadcast %cst_25 : f32 to vector<2x32xf32>
    %58 = arith.addf %56, %57 : vector<2x32xf32>
    %59 = vector.extract_strided_slice %50 {offsets = [0, 32], sizes = [2, 32], strides = [1, 1]} : vector<2x128xf32> to vector<2x32xf32>
    %cst_26 = arith.constant 5.000000e-01 : f32
    %60 = vector.broadcast %cst_26 : f32 to vector<2x32xf32>
    %61 = arith.mulf %60, %59 : vector<2x32xf32>
    %62 = math.tanh %61 : vector<2x32xf32>
    %cst_27 = arith.constant 5.000000e-01 : f32
    %63 = vector.broadcast %cst_27 : f32 to vector<2x32xf32>
    %64 = arith.mulf %63, %62 : vector<2x32xf32>
    %cst_28 = arith.constant 5.000000e-01 : f32
    %65 = vector.broadcast %cst_28 : f32 to vector<2x32xf32>
    %66 = arith.addf %64, %65 : vector<2x32xf32>
    %67 = vector.extract_strided_slice %50 {offsets = [0, 64], sizes = [2, 32], strides = [1, 1]} : vector<2x128xf32> to vector<2x32xf32>
    %68 = math.tanh %67 : vector<2x32xf32>
    %69 = vector.extract_strided_slice %50 {offsets = [0, 96], sizes = [2, 32], strides = [1, 1]} : vector<2x128xf32> to vector<2x32xf32>
    %cst_29 = arith.constant 5.000000e-01 : f32
    %70 = vector.broadcast %cst_29 : f32 to vector<2x32xf32>
    %71 = arith.mulf %70, %69 : vector<2x32xf32>
    %72 = math.tanh %71 : vector<2x32xf32>
    %cst_30 = arith.constant 5.000000e-01 : f32
    %73 = vector.broadcast %cst_30 : f32 to vector<2x32xf32>
    %74 = arith.mulf %73, %72 : vector<2x32xf32>
    %cst_31 = arith.constant 5.000000e-01 : f32
    %75 = vector.broadcast %cst_31 : f32 to vector<2x32xf32>
    %76 = arith.addf %74, %75 : vector<2x32xf32>
    %77 = arith.mulf %66, %39 : vector<2x32xf32>
    %78 = arith.mulf %58, %68 : vector<2x32xf32>
    %79 = arith.addf %77, %78 : vector<2x32xf32>
    %80 = math.tanh %79 : vector<2x32xf32>
    %81 = arith.mulf %76, %80 : vector<2x32xf32>
    %82 = arith.index_cast %c1_i32 : i32 to index
    %c0_32 = arith.constant 0 : index
    %c0_33 = arith.constant 0 : index
    %83 = vector.load %arg9[%82, %c0_32, %c0_33] : memref<8x2x32xf32, #tpu.memory_space<vmem>>, vector<1x2x32xf32>
    %84 = vector.shape_cast %83 : vector<1x2x32xf32> to vector<2x32xf32>
    %85 = vector.shape_cast %81 : vector<2x32xf32> to vector<1x2x32xf32>
    tpu.vector_store %arg9[%82, %c0_32, %c0_33], %85 {strides = array<i32>} : memref<8x2x32xf32, #tpu.memory_space<vmem>>, vector<1x2x32xf32>,
    %c2_i32 = arith.constant 2 : i32
    %86 = arith.index_cast %c2_i32 : i32 to index
    %c0_34 = arith.constant 0 : index
    %c0_35 = arith.constant 0 : index
    %87 = vector.load %arg2[%86, %c0_34, %c0_35] : memref<8x2x128xf32, #tpu.memory_space<vmem>>, vector<1x2x128xf32>
    %88 = vector.shape_cast %87 : vector<1x2x128xf32> to vector<2x128xf32>
    %cst_36 = arith.constant dense<0.000000e+00> : vector<2x128xf32>
    %89 = tpu.matmul %81, %3, %cst_36 {dimension_numbers = #tpu.dot_dimension_numbers<[1], [0], [0], [1], [0, 0, 1, 1], [], []>} : vector<2x32xf32>, vector<32x128xf32>, vector<2x128xf32> -> vector<2x128xf32>
    %90 = arith.addf %88, %89 : vector<2x128xf32>
    %91 = vector.extract_strided_slice %90 {offsets = [0, 0], sizes = [2, 32], strides = [1, 1]} : vector<2x128xf32> to vector<2x32xf32>
    %cst_37 = arith.constant 5.000000e-01 : f32
    %92 = vector.broadcast %cst_37 : f32 to vector<2x32xf32>
    %93 = arith.mulf %92, %91 : vector<2x32xf32>
    %94 = math.tanh %93 : vector<2x32xf32>
    %cst_38 = arith.constant 5.000000e-01 : f32
    %95 = vector.broadcast %cst_38 : f32 to vector<2x32xf32>
    %96 = arith.mulf %95, %94 : vector<2x32xf32>
    %cst_39 = arith.constant 5.000000e-01 : f32
    %97 = vector.broadcast %cst_39 : f32 to vector<2x32xf32>
    %98 = arith.addf %96, %97 : vector<2x32xf32>
    %99 = vector.extract_strided_slice %90 {offsets = [0, 32], sizes = [2, 32], strides = [1, 1]} : vector<2x128xf32> to vector<2x32xf32>
    %cst_40 = arith.constant 5.000000e-01 : f32
    %100 = vector.broadcast %cst_40 : f32 to vector<2x32xf32>
    %101 = arith.mulf %100, %99 : vector<2x32xf32>
    %102 = math.tanh %101 : vector<2x32xf32>
    %cst_41 = arith.constant 5.000000e-01 : f32
    %103 = vector.broadcast %cst_41 : f32 to vector<2x32xf32>
    %104 = arith.mulf %103, %102 : vector<2x32xf32>
    %cst_42 = arith.constant 5.000000e-01 : f32
    %105 = vector.broadcast %cst_42 : f32 to vector<2x32xf32>
    %106 = arith.addf %104, %105 : vector<2x32xf32>
    %107 = vector.extract_strided_slice %90 {offsets = [0, 64], sizes = [2, 32], strides = [1, 1]} : vector<2x128xf32> to vector<2x32xf32>
    %108 = math.tanh %107 : vector<2x32xf32>
    %109 = vector.extract_strided_slice %90 {offsets = [0, 96], sizes = [2, 32], strides = [1, 1]} : vector<2x128xf32> to vector<2x32xf32>
    %cst_43 = arith.constant 5.000000e-01 : f32
    %110 = vector.broadcast %cst_43 : f32 to vector<2x32xf32>
    %111 = arith.mulf %110, %109 : vector<2x32xf32>
    %112 = math.tanh %111 : vector<2x32xf32>
    %cst_44 = arith.constant 5.000000e-01 : f32
    %113 = vector.broadcast %cst_44 : f32 to vector<2x32xf32>
    %114 = arith.mulf %113, %112 : vector<2x32xf32>
    %cst_45 = arith.constant 5.000000e-01 : f32
    %115 = vector.broadcast %cst_45 : f32 to vector<2x32xf32>
    %116 = arith.addf %114, %115 : vector<2x32xf32>
    %117 = arith.mulf %106, %79 : vector<2x32xf32>
    %118 = arith.mulf %98, %108 : vector<2x32xf32>
    %119 = arith.addf %117, %118 : vector<2x32xf32>
    %120 = math.tanh %119 : vector<2x32xf32>
    %121 = arith.mulf %116, %120 : vector<2x32xf32>
    %122 = arith.index_cast %c2_i32 : i32 to index
    %c0_46 = arith.constant 0 : index
    %c0_47 = arith.constant 0 : index
    %123 = vector.load %arg9[%122, %c0_46, %c0_47] : memref<8x2x32xf32, #tpu.memory_space<vmem>>, vector<1x2x32xf32>
    %124 = vector.shape_cast %123 : vector<1x2x32xf32> to vector<2x32xf32>
    %125 = vector.shape_cast %121 : vector<2x32xf32> to vector<1x2x32xf32>
    tpu.vector_store %arg9[%122, %c0_46, %c0_47], %125 {strides = array<i32>} : memref<8x2x32xf32, #tpu.memory_space<vmem>>, vector<1x2x32xf32>,
    %c3_i32 = arith.constant 3 : i32
    %126 = arith.index_cast %c3_i32 : i32 to index
    %c0_48 = arith.constant 0 : index
    %c0_49 = arith.constant 0 : index
    %127 = vector.load %arg2[%126, %c0_48, %c0_49] : memref<8x2x128xf32, #tpu.memory_space<vmem>>, vector<1x2x128xf32>
    %128 = vector.shape_cast %127 : vector<1x2x128xf32> to vector<2x128xf32>
    %cst_50 = arith.constant dense<0.000000e+00> : vector<2x128xf32>
    %129 = tpu.matmul %121, %3, %cst_50 {dimension_numbers = #tpu.dot_dimension_numbers<[1], [0], [0], [1], [0, 0, 1, 1], [], []>} : vector<2x32xf32>, vector<32x128xf32>, vector<2x128xf32> -> vector<2x128xf32>
    %130 = arith.addf %128, %129 : vector<2x128xf32>
    %131 = vector.extract_strided_slice %130 {offsets = [0, 0], sizes = [2, 32], strides = [1, 1]} : vector<2x128xf32> to vector<2x32xf32>
    %cst_51 = arith.constant 5.000000e-01 : f32
    %132 = vector.broadcast %cst_51 : f32 to vector<2x32xf32>
    %133 = arith.mulf %132, %131 : vector<2x32xf32>
    %134 = math.tanh %133 : vector<2x32xf32>
    %cst_52 = arith.constant 5.000000e-01 : f32
    %135 = vector.broadcast %cst_52 : f32 to vector<2x32xf32>
    %136 = arith.mulf %135, %134 : vector<2x32xf32>
    %cst_53 = arith.constant 5.000000e-01 : f32
    %137 = vector.broadcast %cst_53 : f32 to vector<2x32xf32>
    %138 = arith.addf %136, %137 : vector<2x32xf32>
    %139 = vector.extract_strided_slice %130 {offsets = [0, 32], sizes = [2, 32], strides = [1, 1]} : vector<2x128xf32> to vector<2x32xf32>
    %cst_54 = arith.constant 5.000000e-01 : f32
    %140 = vector.broadcast %cst_54 : f32 to vector<2x32xf32>
    %141 = arith.mulf %140, %139 : vector<2x32xf32>
    %142 = math.tanh %141 : vector<2x32xf32>
    %cst_55 = arith.constant 5.000000e-01 : f32
    %143 = vector.broadcast %cst_55 : f32 to vector<2x32xf32>
    %144 = arith.mulf %143, %142 : vector<2x32xf32>
    %cst_56 = arith.constant 5.000000e-01 : f32
    %145 = vector.broadcast %cst_56 : f32 to vector<2x32xf32>
    %146 = arith.addf %144, %145 : vector<2x32xf32>
    %147 = vector.extract_strided_slice %130 {offsets = [0, 64], sizes = [2, 32], strides = [1, 1]} : vector<2x128xf32> to vector<2x32xf32>
    %148 = math.tanh %147 : vector<2x32xf32>
    %149 = vector.extract_strided_slice %130 {offsets = [0, 96], sizes = [2, 32], strides = [1, 1]} : vector<2x128xf32> to vector<2x32xf32>
    %cst_57 = arith.constant 5.000000e-01 : f32
    %150 = vector.broadcast %cst_57 : f32 to vector<2x32xf32>
    %151 = arith.mulf %150, %149 : vector<2x32xf32>
    %152 = math.tanh %151 : vector<2x32xf32>
    %cst_58 = arith.constant 5.000000e-01 : f32
    %153 = vector.broadcast %cst_58 : f32 to vector<2x32xf32>
    %154 = arith.mulf %153, %152 : vector<2x32xf32>
    %cst_59 = arith.constant 5.000000e-01 : f32
    %155 = vector.broadcast %cst_59 : f32 to vector<2x32xf32>
    %156 = arith.addf %154, %155 : vector<2x32xf32>
    %157 = arith.mulf %146, %119 : vector<2x32xf32>
    %158 = arith.mulf %138, %148 : vector<2x32xf32>
    %159 = arith.addf %157, %158 : vector<2x32xf32>
    %160 = math.tanh %159 : vector<2x32xf32>
    %161 = arith.mulf %156, %160 : vector<2x32xf32>
    %162 = arith.index_cast %c3_i32 : i32 to index
    %c0_60 = arith.constant 0 : index
    %c0_61 = arith.constant 0 : index
    %163 = vector.load %arg9[%162, %c0_60, %c0_61] : memref<8x2x32xf32, #tpu.memory_space<vmem>>, vector<1x2x32xf32>
    %164 = vector.shape_cast %163 : vector<1x2x32xf32> to vector<2x32xf32>
    %165 = vector.shape_cast %161 : vector<2x32xf32> to vector<1x2x32xf32>
    tpu.vector_store %arg9[%162, %c0_60, %c0_61], %165 {strides = array<i32>} : memref<8x2x32xf32, #tpu.memory_space<vmem>>, vector<1x2x32xf32>,
    %c4_i32 = arith.constant 4 : i32
    %166 = arith.index_cast %c4_i32 : i32 to index
    %c0_62 = arith.constant 0 : index
    %c0_63 = arith.constant 0 : index
    %167 = vector.load %arg2[%166, %c0_62, %c0_63] : memref<8x2x128xf32, #tpu.memory_space<vmem>>, vector<1x2x128xf32>
    %168 = vector.shape_cast %167 : vector<1x2x128xf32> to vector<2x128xf32>
    %cst_64 = arith.constant dense<0.000000e+00> : vector<2x128xf32>
    %169 = tpu.matmul %161, %3, %cst_64 {dimension_numbers = #tpu.dot_dimension_numbers<[1], [0], [0], [1], [0, 0, 1, 1], [], []>} : vector<2x32xf32>, vector<32x128xf32>, vector<2x128xf32> -> vector<2x128xf32>
    %170 = arith.addf %168, %169 : vector<2x128xf32>
    %171 = vector.extract_strided_slice %170 {offsets = [0, 0], sizes = [2, 32], strides = [1, 1]} : vector<2x128xf32> to vector<2x32xf32>
    %cst_65 = arith.constant 5.000000e-01 : f32
    %172 = vector.broadcast %cst_65 : f32 to vector<2x32xf32>
    %173 = arith.mulf %172, %171 : vector<2x32xf32>
    %174 = math.tanh %173 : vector<2x32xf32>
    %cst_66 = arith.constant 5.000000e-01 : f32
    %175 = vector.broadcast %cst_66 : f32 to vector<2x32xf32>
    %176 = arith.mulf %175, %174 : vector<2x32xf32>
    %cst_67 = arith.constant 5.000000e-01 : f32
    %177 = vector.broadcast %cst_67 : f32 to vector<2x32xf32>
    %178 = arith.addf %176, %177 : vector<2x32xf32>
    %179 = vector.extract_strided_slice %170 {offsets = [0, 32], sizes = [2, 32], strides = [1, 1]} : vector<2x128xf32> to vector<2x32xf32>
    %cst_68 = arith.constant 5.000000e-01 : f32
    %180 = vector.broadcast %cst_68 : f32 to vector<2x32xf32>
    %181 = arith.mulf %180, %179 : vector<2x32xf32>
    %182 = math.tanh %181 : vector<2x32xf32>
    %cst_69 = arith.constant 5.000000e-01 : f32
    %183 = vector.broadcast %cst_69 : f32 to vector<2x32xf32>
    %184 = arith.mulf %183, %182 : vector<2x32xf32>
    %cst_70 = arith.constant 5.000000e-01 : f32
    %185 = vector.broadcast %cst_70 : f32 to vector<2x32xf32>
    %186 = arith.addf %184, %185 : vector<2x32xf32>
    %187 = vector.extract_strided_slice %170 {offsets = [0, 64], sizes = [2, 32], strides = [1, 1]} : vector<2x128xf32> to vector<2x32xf32>
    %188 = math.tanh %187 : vector<2x32xf32>
    %189 = vector.extract_strided_slice %170 {offsets = [0, 96], sizes = [2, 32], strides = [1, 1]} : vector<2x128xf32> to vector<2x32xf32>
    %cst_71 = arith.constant 5.000000e-01 : f32
    %190 = vector.broadcast %cst_71 : f32 to vector<2x32xf32>
    %191 = arith.mulf %190, %189 : vector<2x32xf32>
    %192 = math.tanh %191 : vector<2x32xf32>
    %cst_72 = arith.constant 5.000000e-01 : f32
    %193 = vector.broadcast %cst_72 : f32 to vector<2x32xf32>
    %194 = arith.mulf %193, %192 : vector<2x32xf32>
    %cst_73 = arith.constant 5.000000e-01 : f32
    %195 = vector.broadcast %cst_73 : f32 to vector<2x32xf32>
    %196 = arith.addf %194, %195 : vector<2x32xf32>
    %197 = arith.mulf %186, %159 : vector<2x32xf32>
    %198 = arith.mulf %178, %188 : vector<2x32xf32>
    %199 = arith.addf %197, %198 : vector<2x32xf32>
    %200 = math.tanh %199 : vector<2x32xf32>
    %201 = arith.mulf %196, %200 : vector<2x32xf32>
    %202 = arith.index_cast %c4_i32 : i32 to index
    %c0_74 = arith.constant 0 : index
    %c0_75 = arith.constant 0 : index
    %203 = vector.load %arg9[%202, %c0_74, %c0_75] : memref<8x2x32xf32, #tpu.memory_space<vmem>>, vector<1x2x32xf32>
    %204 = vector.shape_cast %203 : vector<1x2x32xf32> to vector<2x32xf32>
    %205 = vector.shape_cast %201 : vector<2x32xf32> to vector<1x2x32xf32>
    tpu.vector_store %arg9[%202, %c0_74, %c0_75], %205 {strides = array<i32>} : memref<8x2x32xf32, #tpu.memory_space<vmem>>, vector<1x2x32xf32>,
    %c5_i32 = arith.constant 5 : i32
    %206 = arith.index_cast %c5_i32 : i32 to index
    %c0_76 = arith.constant 0 : index
    %c0_77 = arith.constant 0 : index
    %207 = vector.load %arg2[%206, %c0_76, %c0_77] : memref<8x2x128xf32, #tpu.memory_space<vmem>>, vector<1x2x128xf32>
    %208 = vector.shape_cast %207 : vector<1x2x128xf32> to vector<2x128xf32>
    %cst_78 = arith.constant dense<0.000000e+00> : vector<2x128xf32>
    %209 = tpu.matmul %201, %3, %cst_78 {dimension_numbers = #tpu.dot_dimension_numbers<[1], [0], [0], [1], [0, 0, 1, 1], [], []>} : vector<2x32xf32>, vector<32x128xf32>, vector<2x128xf32> -> vector<2x128xf32>
    %210 = arith.addf %208, %209 : vector<2x128xf32>
    %211 = vector.extract_strided_slice %210 {offsets = [0, 0], sizes = [2, 32], strides = [1, 1]} : vector<2x128xf32> to vector<2x32xf32>
    %cst_79 = arith.constant 5.000000e-01 : f32
    %212 = vector.broadcast %cst_79 : f32 to vector<2x32xf32>
    %213 = arith.mulf %212, %211 : vector<2x32xf32>
    %214 = math.tanh %213 : vector<2x32xf32>
    %cst_80 = arith.constant 5.000000e-01 : f32
    %215 = vector.broadcast %cst_80 : f32 to vector<2x32xf32>
    %216 = arith.mulf %215, %214 : vector<2x32xf32>
    %cst_81 = arith.constant 5.000000e-01 : f32
    %217 = vector.broadcast %cst_81 : f32 to vector<2x32xf32>
    %218 = arith.addf %216, %217 : vector<2x32xf32>
    %219 = vector.extract_strided_slice %210 {offsets = [0, 32], sizes = [2, 32], strides = [1, 1]} : vector<2x128xf32> to vector<2x32xf32>
    %cst_82 = arith.constant 5.000000e-01 : f32
    %220 = vector.broadcast %cst_82 : f32 to vector<2x32xf32>
    %221 = arith.mulf %220, %219 : vector<2x32xf32>
    %222 = math.tanh %221 : vector<2x32xf32>
    %cst_83 = arith.constant 5.000000e-01 : f32
    %223 = vector.broadcast %cst_83 : f32 to vector<2x32xf32>
    %224 = arith.mulf %223, %222 : vector<2x32xf32>
    %cst_84 = arith.constant 5.000000e-01 : f32
    %225 = vector.broadcast %cst_84 : f32 to vector<2x32xf32>
    %226 = arith.addf %224, %225 : vector<2x32xf32>
    %227 = vector.extract_strided_slice %210 {offsets = [0, 64], sizes = [2, 32], strides = [1, 1]} : vector<2x128xf32> to vector<2x32xf32>
    %228 = math.tanh %227 : vector<2x32xf32>
    %229 = vector.extract_strided_slice %210 {offsets = [0, 96], sizes = [2, 32], strides = [1, 1]} : vector<2x128xf32> to vector<2x32xf32>
    %cst_85 = arith.constant 5.000000e-01 : f32
    %230 = vector.broadcast %cst_85 : f32 to vector<2x32xf32>
    %231 = arith.mulf %230, %229 : vector<2x32xf32>
    %232 = math.tanh %231 : vector<2x32xf32>
    %cst_86 = arith.constant 5.000000e-01 : f32
    %233 = vector.broadcast %cst_86 : f32 to vector<2x32xf32>
    %234 = arith.mulf %233, %232 : vector<2x32xf32>
    %cst_87 = arith.constant 5.000000e-01 : f32
    %235 = vector.broadcast %cst_87 : f32 to vector<2x32xf32>
    %236 = arith.addf %234, %235 : vector<2x32xf32>
    %237 = arith.mulf %226, %199 : vector<2x32xf32>
    %238 = arith.mulf %218, %228 : vector<2x32xf32>
    %239 = arith.addf %237, %238 : vector<2x32xf32>
    %240 = math.tanh %239 : vector<2x32xf32>
    %241 = arith.mulf %236, %240 : vector<2x32xf32>
    %242 = arith.index_cast %c5_i32 : i32 to index
    %c0_88 = arith.constant 0 : index
    %c0_89 = arith.constant 0 : index
    %243 = vector.load %arg9[%242, %c0_88, %c0_89] : memref<8x2x32xf32, #tpu.memory_space<vmem>>, vector<1x2x32xf32>
    %244 = vector.shape_cast %243 : vector<1x2x32xf32> to vector<2x32xf32>
    %245 = vector.shape_cast %241 : vector<2x32xf32> to vector<1x2x32xf32>
    tpu.vector_store %arg9[%242, %c0_88, %c0_89], %245 {strides = array<i32>} : memref<8x2x32xf32, #tpu.memory_space<vmem>>, vector<1x2x32xf32>,
    %c6_i32 = arith.constant 6 : i32
    %246 = arith.index_cast %c6_i32 : i32 to index
    %c0_90 = arith.constant 0 : index
    %c0_91 = arith.constant 0 : index
    %247 = vector.load %arg2[%246, %c0_90, %c0_91] : memref<8x2x128xf32, #tpu.memory_space<vmem>>, vector<1x2x128xf32>
    %248 = vector.shape_cast %247 : vector<1x2x128xf32> to vector<2x128xf32>
    %cst_92 = arith.constant dense<0.000000e+00> : vector<2x128xf32>
    %249 = tpu.matmul %241, %3, %cst_92 {dimension_numbers = #tpu.dot_dimension_numbers<[1], [0], [0], [1], [0, 0, 1, 1], [], []>} : vector<2x32xf32>, vector<32x128xf32>, vector<2x128xf32> -> vector<2x128xf32>
    %250 = arith.addf %248, %249 : vector<2x128xf32>
    %251 = vector.extract_strided_slice %250 {offsets = [0, 0], sizes = [2, 32], strides = [1, 1]} : vector<2x128xf32> to vector<2x32xf32>
    %cst_93 = arith.constant 5.000000e-01 : f32
    %252 = vector.broadcast %cst_93 : f32 to vector<2x32xf32>
    %253 = arith.mulf %252, %251 : vector<2x32xf32>
    %254 = math.tanh %253 : vector<2x32xf32>
    %cst_94 = arith.constant 5.000000e-01 : f32
    %255 = vector.broadcast %cst_94 : f32 to vector<2x32xf32>
    %256 = arith.mulf %255, %254 : vector<2x32xf32>
    %cst_95 = arith.constant 5.000000e-01 : f32
    %257 = vector.broadcast %cst_95 : f32 to vector<2x32xf32>
    %258 = arith.addf %256, %257 : vector<2x32xf32>
    %259 = vector.extract_strided_slice %250 {offsets = [0, 32], sizes = [2, 32], strides = [1, 1]} : vector<2x128xf32> to vector<2x32xf32>
    %cst_96 = arith.constant 5.000000e-01 : f32
    %260 = vector.broadcast %cst_96 : f32 to vector<2x32xf32>
    %261 = arith.mulf %260, %259 : vector<2x32xf32>
    %262 = math.tanh %261 : vector<2x32xf32>
    %cst_97 = arith.constant 5.000000e-01 : f32
    %263 = vector.broadcast %cst_97 : f32 to vector<2x32xf32>
    %264 = arith.mulf %263, %262 : vector<2x32xf32>
    %cst_98 = arith.constant 5.000000e-01 : f32
    %265 = vector.broadcast %cst_98 : f32 to vector<2x32xf32>
    %266 = arith.addf %264, %265 : vector<2x32xf32>
    %267 = vector.extract_strided_slice %250 {offsets = [0, 64], sizes = [2, 32], strides = [1, 1]} : vector<2x128xf32> to vector<2x32xf32>
    %268 = math.tanh %267 : vector<2x32xf32>
    %269 = vector.extract_strided_slice %250 {offsets = [0, 96], sizes = [2, 32], strides = [1, 1]} : vector<2x128xf32> to vector<2x32xf32>
    %cst_99 = arith.constant 5.000000e-01 : f32
    %270 = vector.broadcast %cst_99 : f32 to vector<2x32xf32>
    %271 = arith.mulf %270, %269 : vector<2x32xf32>
    %272 = math.tanh %271 : vector<2x32xf32>
    %cst_100 = arith.constant 5.000000e-01 : f32
    %273 = vector.broadcast %cst_100 : f32 to vector<2x32xf32>
    %274 = arith.mulf %273, %272 : vector<2x32xf32>
    %cst_101 = arith.constant 5.000000e-01 : f32
    %275 = vector.broadcast %cst_101 : f32 to vector<2x32xf32>
    %276 = arith.addf %274, %275 : vector<2x32xf32>
    %277 = arith.mulf %266, %239 : vector<2x32xf32>
    %278 = arith.mulf %258, %268 : vector<2x32xf32>
    %279 = arith.addf %277, %278 : vector<2x32xf32>
    %280 = math.tanh %279 : vector<2x32xf32>
    %281 = arith.mulf %276, %280 : vector<2x32xf32>
    %282 = arith.index_cast %c6_i32 : i32 to index
    %c0_102 = arith.constant 0 : index
    %c0_103 = arith.constant 0 : index
    %283 = vector.load %arg9[%282, %c0_102, %c0_103] : memref<8x2x32xf32, #tpu.memory_space<vmem>>, vector<1x2x32xf32>
    %284 = vector.shape_cast %283 : vector<1x2x32xf32> to vector<2x32xf32>
    %285 = vector.shape_cast %281 : vector<2x32xf32> to vector<1x2x32xf32>
    tpu.vector_store %arg9[%282, %c0_102, %c0_103], %285 {strides = array<i32>} : memref<8x2x32xf32, #tpu.memory_space<vmem>>, vector<1x2x32xf32>,
    %c7_i32 = arith.constant 7 : i32
    %286 = arith.index_cast %c7_i32 : i32 to index
    %c0_104 = arith.constant 0 : index
    %c0_105 = arith.constant 0 : index
    %287 = vector.load %arg2[%286, %c0_104, %c0_105] : memref<8x2x128xf32, #tpu.memory_space<vmem>>, vector<1x2x128xf32>
    %288 = vector.shape_cast %287 : vector<1x2x128xf32> to vector<2x128xf32>
    %cst_106 = arith.constant dense<0.000000e+00> : vector<2x128xf32>
    %289 = tpu.matmul %281, %3, %cst_106 {dimension_numbers = #tpu.dot_dimension_numbers<[1], [0], [0], [1], [0, 0, 1, 1], [], []>} : vector<2x32xf32>, vector<32x128xf32>, vector<2x128xf32> -> vector<2x128xf32>
    %290 = arith.addf %288, %289 : vector<2x128xf32>
    %291 = vector.extract_strided_slice %290 {offsets = [0, 0], sizes = [2, 32], strides = [1, 1]} : vector<2x128xf32> to vector<2x32xf32>
    %cst_107 = arith.constant 5.000000e-01 : f32
    %292 = vector.broadcast %cst_107 : f32 to vector<2x32xf32>
    %293 = arith.mulf %292, %291 : vector<2x32xf32>
    %294 = math.tanh %293 : vector<2x32xf32>
    %cst_108 = arith.constant 5.000000e-01 : f32
    %295 = vector.broadcast %cst_108 : f32 to vector<2x32xf32>
    %296 = arith.mulf %295, %294 : vector<2x32xf32>
    %cst_109 = arith.constant 5.000000e-01 : f32
    %297 = vector.broadcast %cst_109 : f32 to vector<2x32xf32>
    %298 = arith.addf %296, %297 : vector<2x32xf32>
    %299 = vector.extract_strided_slice %290 {offsets = [0, 32], sizes = [2, 32], strides = [1, 1]} : vector<2x128xf32> to vector<2x32xf32>
    %cst_110 = arith.constant 5.000000e-01 : f32
    %300 = vector.broadcast %cst_110 : f32 to vector<2x32xf32>
    %301 = arith.mulf %300, %299 : vector<2x32xf32>
    %302 = math.tanh %301 : vector<2x32xf32>
    %cst_111 = arith.constant 5.000000e-01 : f32
    %303 = vector.broadcast %cst_111 : f32 to vector<2x32xf32>
    %304 = arith.mulf %303, %302 : vector<2x32xf32>
    %cst_112 = arith.constant 5.000000e-01 : f32
    %305 = vector.broadcast %cst_112 : f32 to vector<2x32xf32>
    %306 = arith.addf %304, %305 : vector<2x32xf32>
    %307 = vector.extract_strided_slice %290 {offsets = [0, 64], sizes = [2, 32], strides = [1, 1]} : vector<2x128xf32> to vector<2x32xf32>
    %308 = math.tanh %307 : vector<2x32xf32>
    %309 = vector.extract_strided_slice %290 {offsets = [0, 96], sizes = [2, 32], strides = [1, 1]} : vector<2x128xf32> to vector<2x32xf32>
    %cst_113 = arith.constant 5.000000e-01 : f32
    %310 = vector.broadcast %cst_113 : f32 to vector<2x32xf32>
    %311 = arith.mulf %310, %309 : vector<2x32xf32>
    %312 = math.tanh %311 : vector<2x32xf32>
    %cst_114 = arith.constant 5.000000e-01 : f32
    %313 = vector.broadcast %cst_114 : f32 to vector<2x32xf32>
    %314 = arith.mulf %313, %312 : vector<2x32xf32>
    %cst_115 = arith.constant 5.000000e-01 : f32
    %315 = vector.broadcast %cst_115 : f32 to vector<2x32xf32>
    %316 = arith.addf %314, %315 : vector<2x32xf32>
    %317 = arith.mulf %306, %279 : vector<2x32xf32>
    %318 = arith.mulf %298, %308 : vector<2x32xf32>
    %319 = arith.addf %317, %318 : vector<2x32xf32>
    %320 = math.tanh %319 : vector<2x32xf32>
    %321 = arith.mulf %316, %320 : vector<2x32xf32>
    %322 = arith.index_cast %c7_i32 : i32 to index
    %c0_116 = arith.constant 0 : index
    %c0_117 = arith.constant 0 : index
    %323 = vector.load %arg9[%322, %c0_116, %c0_117] : memref<8x2x32xf32, #tpu.memory_space<vmem>>, vector<1x2x32xf32>
    %324 = vector.shape_cast %323 : vector<1x2x32xf32> to vector<2x32xf32>
    %325 = vector.shape_cast %321 : vector<2x32xf32> to vector<1x2x32xf32>
    tpu.vector_store %arg9[%322, %c0_116, %c0_117], %325 {strides = array<i32>} : memref<8x2x32xf32, #tpu.memory_space<vmem>>, vector<1x2x32xf32>,
    %c8_i32 = arith.constant 8 : i32
    %c0_118 = arith.constant 0 : index
    %c0_119 = arith.constant 0 : index
    %326 = vector.load %arg7[%c0_118, %c0_119] : memref<2x32xf32, #tpu.memory_space<vmem>>, vector<2x32xf32>
    tpu.vector_store %arg7[%c0_118, %c0_119], %321 {strides = array<i32>} : memref<2x32xf32, #tpu.memory_space<vmem>>, vector<2x32xf32>,
    %c0_120 = arith.constant 0 : index
    %c0_121 = arith.constant 0 : index
    %327 = vector.load %arg8[%c0_120, %c0_121] : memref<2x32xf32, #tpu.memory_space<vmem>>, vector<2x32xf32>
    tpu.vector_store %arg8[%c0_120, %c0_121], %319 {strides = array<i32>} : memref<2x32xf32, #tpu.memory_space<vmem>>, vector<2x32xf32>,
    %c0_122 = arith.constant 0 : index
    %c0_123 = arith.constant 0 : index
    %c0_124 = arith.constant 0 : index
    %328 = vector.load %arg9[%c0_122, %c0_123, %c0_124] : memref<8x2x32xf32, #tpu.memory_space<vmem>>, vector<8x2x32xf32>
    %329 = tpu.transpose %328, [1, 0, 2] : vector<8x2x32xf32> -> vector<2x8x32xf32>
    %c0_125 = arith.constant 0 : index
    %c0_126 = arith.constant 0 : index
    %c0_127 = arith.constant 0 : index
    %330 = vector.load %arg4[%c0_125, %c0_126, %c0_127] : memref<2x8x32xf32, #tpu.memory_space<vmem>>, vector<2x8x32xf32>
    tpu.vector_store %arg4[%c0_125, %c0_126, %c0_127], %329 {strides = array<i32>} : memref<2x8x32xf32, #tpu.memory_space<vmem>>, vector<2x8x32xf32>,
    %c1_i32_128 = arith.constant 1 : i32
    %331 = arith.cmpi eq, %arg1, %c1_i32_128 : i32
    %332 = arith.extui %331 : i1 to i32
    %c0_i32_129 = arith.constant 0 : i32
    %333 = arith.cmpi ne, %332, %c0_i32_129 : i32
    scf.if %333 {
      %c0_130 = arith.constant 0 : index
      %c0_131 = arith.constant 0 : index
      %334 = vector.load %arg5[%c0_130, %c0_131] : memref<2x32xf32, #tpu.memory_space<vmem>>, vector<2x32xf32>
      tpu.vector_store %arg5[%c0_130, %c0_131], %321 {strides = array<i32>} : memref<2x32xf32, #tpu.memory_space<vmem>>, vector<2x32xf32>,
      %c0_132 = arith.constant 0 : index
      %c0_133 = arith.constant 0 : index
      %335 = vector.load %arg6[%c0_132, %c0_133] : memref<2x32xf32, #tpu.memory_space<vmem>>, vector<2x32xf32>
      tpu.vector_store %arg6[%c0_132, %c0_133], %319 {strides = array<i32>} : memref<2x32xf32, #tpu.memory_space<vmem>>, vector<2x32xf32>,
    } else {
    }
    return
  }
  func.func @transform_0(%arg0: i32, %arg1: i32) -> (i32, i32, i32) {
    %c0_i32 = arith.constant 0 : i32
    %c0_i32_0 = arith.constant 0 : i32
    return %arg1, %arg0, %c0_i32 : i32, i32, i32
  }
  func.func @transform_1(%arg0: i32, %arg1: i32) -> (i32, i32) {
    %c0_i32 = arith.constant 0 : i32
    %c0_i32_0 = arith.constant 0 : i32
    %c0_i32_1 = arith.constant 0 : i32
    return %c0_i32, %c0_i32_0 : i32, i32
  }
  func.func @transform_2(%arg0: i32, %arg1: i32) -> (i32, i32, i32) {
    %c0_i32 = arith.constant 0 : i32
    %c0_i32_0 = arith.constant 0 : i32
    return %arg0, %arg1, %c0_i32 : i32, i32, i32
  }
  func.func @transform_3(%arg0: i32, %arg1: i32) -> (i32, i32) {
    %c0_i32 = arith.constant 0 : i32
    %c0_i32_0 = arith.constant 0 : i32
    return %arg0, %c0_i32 : i32, i32
  }
  func.func @transform_4(%arg0: i32, %arg1: i32) -> (i32, i32) {
    %c0_i32 = arith.constant 0 : i32
    %c0_i32_0 = arith.constant 0 : i32
    return %arg0, %c0_i32 : i32, i32
  }
}

</mosaic_0001>

<llo_original>
// kernel: tpu_custom_call.1
$region0: #{tpu_custom_call.1}
  #allocation0 [shape = 'u32[]', space=smem, size = 0x4, offset = 0x4, fixed_abs, tag = 'smem constant byte address 0x4 - core index']
  #allocation1 [shape = 'u32[144,128]{1,0:T(1,128)}', space=vmem, size = 0x12000, scoped, tag = 'internal scratch']
  #allocation2 [shape = 'f32[2,32]{1,0:T(2,128)}', space=vmem, size = 0x400, scoped, tag = 'scratch operand']
  #allocation3 [shape = 'f32[2,32]{1,0:T(2,128)}', space=vmem, size = 0x400, scoped, tag = 'scratch operand']
  #allocation4 [shape = 'f32[8,2,32]{2,1,0:T(2,128)}', space=vmem, size = 0x2000, scoped, tag = 'scratch operand']
  %s0 = inlined_call_operand.hbm [shape: f32[16,2,128], index: 0, kind: input, shape index: {}]
  %s1 = inlined_call_operand.hbm [shape: f32[32,128], index: 1, kind: input, shape index: {}]
  %s2 = inlined_call_operand.hbm [shape: f32[2,16,32], index: 2, kind: output, shape index: {0}]
  %s3 = inlined_call_operand.hbm [shape: f32[2,32], index: 3, kind: output, shape index: {1}]
  %s4 = inlined_call_operand.hbm [shape: f32[2,32], index: 4, kind: output, shape index: {2}]
  %5 = xla_tuple %s2, %s3, %s4
  %s6 = sld [smem:[#allocation0]]
  $region73: #{tpu_custom_call.1} parent=0
    _
  %s8 = ssub.s32 1, %s6
  %s9 = scalar_select 0, %s8, %s6
  $region1: #{tpu_custom_call.1} parent=0
    #allocation5 [shape = 'u8[16384]{0}', space=vmem, size = 0x4000, scoped, tag = 'input window, operand 0']
    #allocation6 [shape = 's32[2]{0}', space=sflag, size = 0x8, scoped, tag = 'scoped memory for tpu_custom_call.1']
    #allocation7 [shape = 's32[2]{0}', space=sflag, size = 0x8, scoped, tag = 'scoped memory for tpu_custom_call.1']
    #allocation8 [shape = 'u8[16384]{0}', space=vmem, size = 0x4000, scoped, tag = 'input window, operand 1, single buffered']
    #allocation9 [shape = 's32[1]{0}', space=sflag, size = 0x4, scoped, tag = 'scoped memory for tpu_custom_call.1']
    #allocation10 [shape = 'u8[16384]{0}', space=vmem, size = 0x4000, scoped, tag = 'output window, operand 0']
    #allocation11 [shape = 'u8[1024]{0}', space=vmem, size = 0x400, scoped, tag = 'output window, operand 1, single buffered']
    #allocation12 [shape = 's32[1]{0}', space=sflag, size = 0x4, scoped, tag = 'scoped memory for tpu_custom_call.1']
    #allocation13 [shape = 'u8[1024]{0}', space=vmem, size = 0x400, scoped, tag = 'output window, operand 2, single buffered']
    %10 = vsyncpa [#allocation6], 0
    %s11 = scalar_lea.sflag [#allocation6], 1
    %12 = vsyncpa %s11, 0
    %13 = vsyncpa [#allocation9], 0
    %14 = vsyncpa [#allocation7], 0
    %s15 = scalar_lea.sflag [#allocation7], 1
    %16 = vsyncpa %s15, 0
    %17 = vsyncpa [#allocation12], 0
    loop: start=0, step=1, limit=4
    $region2: #{tpu_custom_call.1} parent=1 // loop_pre_header
      _
    $region3: #{tpu_custom_call.1} parent=1 // loop_header
      %s19 = sphi 0, %s23
      %p20 = scmp.ge.s32.totalorder %s19, 4
      %s26 = sphi 0, %s38
      %s27 = sphi 0, %s34
      %s28 = sphi 0, %s26
      %s29 = sphi 0, %s27
      %s30 = sphi 0, %s28
      %s31 = sphi 0, %s29
      %s43 = sphi 0, %s45
      %s46 = sphi 0, %s43
      %s47 = sphi 0, %s46
      %s63 = sphi 0, %s47
      %s67 = sphi 0, %s67
      %s69 = sphi 0, %s67
      %s70 = sphi 0, %s69
      %s84 = sphi 0, %s70
      %s92 = sphi 0, %s94
      %s95 = sphi 0, %s92
      %s96 = sphi 0, %s95
      %s112 = sphi 0, %s96
      %s118 = sphi 0, %s120
      %s121 = sphi 0, %s118
      %s122 = sphi 0, %s121
      %s138 = sphi 0, %s122
      %s144 = sphi 0, %s146
      %s147 = sphi 0, %s144
      %s148 = sphi 0, %s147
      %s164 = sphi 0, %s148
    $region4: #{tpu_custom_call.1} parent=1 // loop_header_branch
      %22 = sbr.rel (%p20) target = $region8
    $region5: #{tpu_custom_call.1} parent=1 // loop_body
      %s24 = ssub.s32 %s19, 1
      %s25 = ssub.s32 %s19, 2
      %s32 = sadd.s32 1, %s27
      %p33 = scmp.ge.s32.totalorder %s32, 2
      %s34 = scalar_select %p33, 0, %s32
      %s35 = sadd.s32 1, %s26
      %s36 = scalar_select %p33, %s35, %s26
      %p37 = scmp.ge.s32.totalorder %s36, 1
      %s38 = scalar_select %p37, 0, %s36
      %s39 = ssub.s32 %s27, %s34
      %s40 = ssub.s32 %s26, %s38
      %s41 = sor.u32 %s39, %s40
      %p42 = scmp.eq.s32.totalorder %s41, 0
      %s44 = sadd.s32 %s43, 1
      %s45 = scalar_select %p42, %s43, %s44
      %p48 = pneg %p42
      %p49 = scmp.eq.s32.totalorder %s19, 1
      %p50 = por %p48, %p49
      %p51 = scmp.ne.s32.totalorder %s43, %s46
      %p52 = scmp.eq.s32.totalorder %s19, 0
      %p53 = por %p51, %p52
      %p54 = scmp.ne.s32.totalorder %s43, %s46
      %p55 = scmp.eq.s32.totalorder %s24, 1
      %p56 = por %p54, %p55
      %p57 = scmp.ne.s32.totalorder %s46, %s47
      %p58 = scmp.eq.s32.totalorder %s24, 0
      %p59 = por %p57, %p58
      %p60 = scmp.ne.s32.totalorder %s46, %s47
      %p61 = scmp.eq.s32.totalorder %s25, 1
      %p62 = por %p60, %p61
      %p64 = scmp.ne.s32.totalorder %s47, %s63
      %p65 = scmp.eq.s32.totalorder %s25, 0
      %p66 = por %p64, %p65
      %s68 = sadd.s32 %s67, 1
      %p71 = scmp.eq.s32.totalorder %s19, 1
      %p72 = scmp.ne.s32.totalorder %s67, %s69
      %p73 = scmp.eq.s32.totalorder %s19, 0
      %p74 = por %p72, %p73
      %p75 = scmp.ne.s32.totalorder %s67, %s69
      %p76 = scmp.eq.s32.totalorder %s24, 1
      %p77 = por %p75, %p76
      %p78 = scmp.ne.s32.totalorder %s69, %s70
      %p79 = scmp.eq.s32.totalorder %s24, 0
      %p80 = por %p78, %p79
      %p81 = scmp.ne.s32.totalorder %s69, %s70
      %p82 = scmp.eq.s32.totalorder %s25, 1
      %p83 = por %p81, %p82
      %p85 = scmp.ne.s32.totalorder %s70, %s84
      %p86 = scmp.eq.s32.totalorder %s25, 0
      %p87 = por %p85, %p86
      %s88 = ssub.s32 %s26, %s38
      %s89 = ssub.s32 %s27, %s34
      %s90 = sor.u32 %s88, %s89
      %p91 = scmp.eq.s32.totalorder %s90, 0
      %s93 = sadd.s32 %s92, 1
      %s94 = scalar_select %p91, %s92, %s93
      %p97 = pneg %p91
      %p98 = scmp.eq.s32.totalorder %s19, 1
      %p99 = por %p97, %p98
      %p100 = scmp.ne.s32.totalorder %s92, %s95
      %p101 = scmp.eq.s32.totalorder %s19, 0
      %p102 = por %p100, %p101
      %p103 = scmp.ne.s32.totalorder %s92, %s95
      %p104 = scmp.eq.s32.totalorder %s24, 1
      %p105 = por %p103, %p104
      %p106 = scmp.ne.s32.totalorder %s95, %s96
      %p107 = scmp.eq.s32.totalorder %s24, 0
      %p108 = por %p106, %p107
      %p109 = scmp.ne.s32.totalorder %s95, %s96
      %p110 = scmp.eq.s32.totalorder %s25, 1
      %p111 = por %p109, %p110
      %p113 = scmp.ne.s32.totalorder %s96, %s112
      %p114 = scmp.eq.s32.totalorder %s25, 0
      %p115 = por %p113, %p114
      %s116 = ssub.s32 %s26, %s38
      %p117 = scmp.eq.s32.totalorder %s116, 0
      %s119 = sadd.s32 %s118, 1
      %s120 = scalar_select %p117, %s118, %s119
      %p123 = pneg %p117
      %p124 = scmp.eq.s32.totalorder %s19, 1
      %p125 = por %p123, %p124
      %p126 = scmp.ne.s32.totalorder %s118, %s121
      %p127 = scmp.eq.s32.totalorder %s19, 0
      %p128 = por %p126, %p127
      %p129 = scmp.ne.s32.totalorder %s118, %s121
      %p130 = scmp.eq.s32.totalorder %s24, 1
      %p131 = por %p129, %p130
      %p132 = scmp.ne.s32.totalorder %s121, %s122
      %p133 = scmp.eq.s32.totalorder %s24, 0
      %p134 = por %p132, %p133
      %p135 = scmp.ne.s32.totalorder %s121, %s122
      %p136 = scmp.eq.s32.totalorder %s25, 1
      %p137 = por %p135, %p136
      %p139 = scmp.ne.s32.totalorder %s122, %s138
      %p140 = scmp.eq.s32.totalorder %s25, 0
      %p141 = por %p139, %p140
      %s142 = ssub.s32 %s26, %s38
      %p143 = scmp.eq.s32.totalorder %s142, 0
      %s145 = sadd.s32 %s144, 1
      %s146 = scalar_select %p143, %s144, %s145
      %p149 = pneg %p143
      %p150 = scmp.eq.s32.totalorder %s19, 1
      %p151 = por %p149, %p150
      %p152 = scmp.ne.s32.totalorder %s144, %s147
      %p153 = scmp.eq.s32.totalorder %s19, 0
      %p154 = por %p152, %p153
      %p155 = scmp.ne.s32.totalorder %s144, %s147
      %p156 = scmp.eq.s32.totalorder %s24, 1
      %p157 = por %p155, %p156
      %p158 = scmp.ne.s32.totalorder %s147, %s148
      %p159 = scmp.eq.s32.totalorder %s24, 0
      %p160 = por %p158, %p159
      %p161 = scmp.ne.s32.totalorder %s147, %s148
      %p162 = scmp.eq.s32.totalorder %s25, 1
      %p163 = por %p161, %p162
      %p165 = scmp.ne.s32.totalorder %s148, %s164
      %p166 = scmp.eq.s32.totalorder %s25, 0
      %p167 = por %p165, %p166
      %p168 = scmp.le.s32.totalorder 1, %s19
      %p169 = scmp.lt.s32.totalorder %s19, 3
      %p170 = pnand %p168, %p169
      %p171 = pneg %p170
      // Predicated region
      $region9: #{tpu_custom_call.1} parent=5 // pred_check
        _
      $region10: #{tpu_custom_call.1} parent=5 // pred_check_branch
        %173 = sbr.rel (%p170) target = $region12
      $region11: #{tpu_custom_call.1} parent=5 // pred_region
        %s174 = ssub.s32 %s19, 1
        // Predicated region
        $region13: #{tpu_custom_call.1} parent=11 // pred_check
          %p175 = pneg %p80
        $region14: #{tpu_custom_call.1} parent=11 // pred_check_branch
          %177 = sbr.rel (%p175) target = $region16
        $region15: #{tpu_custom_call.1} parent=11 // pred_region
          %s179 = ssub.s32 512, 512
          %180 = vsyncadd [#allocation9], %s179
          %s181 = sshll.u32 [#allocation8], 4
          %s182 = int_to_ptr.vmem [resolvable:$true] %s181
          %187 = dma.hbm_to_vmem [thread:$0]  %s1, 512, %s182, [#allocation9], 128, 128, 8
        $region16: #{tpu_custom_call.1} parent=11 // pred_fallthru
          _
      $region12: #{tpu_custom_call.1} parent=5 // pred_fallthru
        _
      %p188 = scmp.lt.s32.totalorder %s19, 2
      // Predicated region
      $region17: #{tpu_custom_call.1} parent=5 // pred_check
        %p189 = pneg %p188
      $region18: #{tpu_custom_call.1} parent=5 // pred_check_branch
        %191 = sbr.rel (%p189) target = $region20
      $region19: #{tpu_custom_call.1} parent=5 // pred_region
        // Predicated region
        $region21: #{tpu_custom_call.1} parent=19 // pred_check
          %p192 = pneg %p53
        $region22: #{tpu_custom_call.1} parent=19 // pred_check_branch
          %194 = sbr.rel (%p192) target = $region24
        $region23: #{tpu_custom_call.1} parent=19 // pred_region
          %s195 = sand.u32 %s43, 1
          %s196 = scalar_lea.sflag [#allocation6], %s195
          %s197 = sand.u32 %s43, 1
          %s198 = smul.addr %s197, 16
          %s199 = scalar_lea.vmem [#allocation5], %s198
          %s200 = smul.u32 8, %s27
          %s202 = ssub.s32 256, 256
          %203 = vsyncadd %s196, %s202
          %s204 = sadd.s32 %s26, %s200
          %s205 = smul.addr %s204, 32
          %s206 = scalar_lea.hbm %s0, %s205
          %s207 = sshll.u32 %s199, 4
          %s208 = int_to_ptr.vmem [resolvable:$true] %s207
          %213 = dma.hbm_to_vmem [thread:$0]  %s206, 256, %s208, %s196, 32, 32, 2
        $region24: #{tpu_custom_call.1} parent=19 // pred_fallthru
          _
      $region20: #{tpu_custom_call.1} parent=5 // pred_fallthru
        _
      %p214 = scmp.le.s32.totalorder 1, %s19
      %p215 = scmp.lt.s32.totalorder %s19, 3
      %p216 = pnand %p214, %p215
      %p217 = pneg %p216
      // Predicated region
      $region25: #{tpu_custom_call.1} parent=5 // pred_check
        _
      $region26: #{tpu_custom_call.1} parent=5 // pred_check_branch
        %219 = sbr.rel (%p216) target = $region28
      $region27: #{tpu_custom_call.1} parent=5 // pred_region
        %s220 = ssub.s32 %s19, 1
        %s221 = sand.u32 %s46, 1
        %s222 = scalar_lea.sflag [#allocation6], %s221
        %s223 = sand.u32 %s46, 1
        %s224 = smul.addr %s223, 16
        %s225 = scalar_lea.vmem [#allocation5], %s224
        // Predicated region
        $region29: #{tpu_custom_call.1} parent=27 // pred_check
          %p226 = pneg %p59
        $region30: #{tpu_custom_call.1} parent=27 // pred_check_branch
          %228 = sbr.rel (%p226) target = $region32
        $region31: #{tpu_custom_call.1} parent=27 // pred_region
          %229 = dma.done %s222, 256
        $region32: #{tpu_custom_call.1} parent=27 // pred_fallthru
          _
        // Predicated region
        $region33: #{tpu_custom_call.1} parent=27 // pred_check
          %p230 = pneg %p80
        $region34: #{tpu_custom_call.1} parent=27 // pred_check_branch
          %232 = sbr.rel (%p230) target = $region36
        $region35: #{tpu_custom_call.1} parent=27 // pred_region
          %233 = dma.done [#allocation9], 512
        $region36: #{tpu_custom_call.1} parent=27 // pred_fallthru
          _
        %s234 = sand.u32 %s46, 1
        %s235 = scalar_lea.sflag [#allocation6], %s234
        %s236 = sand.u32 %s46, 1
        %s237 = smul.addr %s236, 16
        %s238 = scalar_lea.vmem [#allocation5], %s237
        %p239 = pneg %p59
        %p240 = pneg %p56
        %p241 = pneg %p80
        %p242 = pneg %p77
        %p243 = pneg %p108
        %p244 = pneg %p105
        %s245 = sand.u32 %s95, 1
        %s246 = scalar_lea.sflag [#allocation7], %s245
        %s247 = sand.u32 %s95, 1
        %s248 = smul.addr %s247, 16
        %s249 = scalar_lea.vmem [#allocation10], %s248
        %p250 = pneg %p134
        %p251 = pneg %p131
        %p252 = pneg %p160
        %p253 = pneg %p157
        %s254 = smul.u32 8, %s29
        %s255 = smul.u32 2, %s28
        %p256 = scmp.eq.s32.totalorder %s29, 0
        // Predicated region
        $region37: #{tpu_custom_call.1} parent=27 // pred_check
          %p257 = pneg %p256
        $region38: #{tpu_custom_call.1} parent=27 // pred_check_branch
          %259 = sbr.rel (%p257) target = $region40
        $region39: #{tpu_custom_call.1} parent=27 // pred_region
          %vm260 = vcmask 254976
          %261 = vst.msk [vmem:[#allocation2] sm:$0x3] %vm260, 0.0
          %262 = vst.msk [vmem:[#allocation3] sm:$0x3] %vm260, 0.0
        $region40: #{tpu_custom_call.1} parent=27 // pred_fallthru
          _
        %v263 = vld [vmem:[#allocation8] sm:$0xff]
        %v264 = vld [vmem:[#allocation8 + $0x8] sm:$0xff]
        %v265 = vld [vmem:[#allocation8 + $0x10] sm:$0xff]
        %v266 = vld [vmem:[#allocation8 + $0x18] sm:$0xff]
        %v267 = vld [vmem:[#allocation2] sm:$0x3]
        %v268 = vld [vmem:[#allocation3] sm:$0x3]
        %v269 = vld [vmem:[%s225] sm:$0x3]
        %vm270 = vcmask 261120
        %v272 = vsel %vm270, %v267, 0
        %274 = vmatprep.subr.mxu0 0.0
        %275 = vmatpush1.msra.mxu0 0.0
        %276 = vmatprep.subr.mxu0 0.0
        %277 = vmatpush1.msra.mxu0 0.0
        %278 = vmatprep.subr.mxu0 0.0
        %279 = vmatpush1.msra.mxu0 0.0
        %280 = vmatprep.subr.mxu0 0.0
        %281 = vmatpush1.msra.mxu0 0.0
        %282 = vmatprep.subr.mxu0 0.0
        %283 = vmatpush1.msra.mxu0 0.0
        %284 = vmatprep.subr.mxu0 0.0
        %285 = vmatpush1.msra.mxu0 0.0
        %286 = vmatprep.subr.mxu0 0.0
        %287 = vmatpush1.msra.mxu0 0.0
        %288 = vmatprep.subr.mxu0 0.0
        %289 = vmatpush1.msra.mxu0 0.0
        %290 = vmatprep.subr.mxu0 0.0
        %291 = vmatpush1.msra.mxu0 0.0
        %292 = vmatprep.subr.mxu0 0.0
        %293 = vmatpush1.msra.mxu0 0.0
        %294 = vmatprep.subr.mxu0 0.0
        %295 = vmatpush1.msra.mxu0 0.0
        %296 = vmatprep.subr.mxu0 0.0
        %297 = vmatpush1.msra.mxu0 0.0
        %298 = vmatprep.subr.mxu0 0.0
        %299 = vmatpush1.msra.mxu0 %v266
        %300 = vmatprep.subr.mxu0 0.0
        %301 = vmatpush1.msra.mxu0 %v265
        %302 = vmatprep.subr.mxu0 0.0
        %303 = vmatpush1.msra.mxu0 %v264
        %304 = vmatprep.subr.mxu0 0.0
        %305 = vmatpush1.msra.mxu0 %v263
        %306 = vmatprep.subr.mxu0 0.0
        %307 = vmatpush2.msra.mxu0 0.0
        %308 = vmatprep.subr.mxu0 0.0
        %309 = vmatpush2.msra.mxu0 0.0
        %310 = vmatprep.subr.mxu0 0.0
        %311 = vmatpush2.msra.mxu0 0.0
        %312 = vmatprep.subr.mxu0 0.0
        %313 = vmatpush2.msra.mxu0 0.0
        %314 = vmatprep.subr.mxu0 0.0
        %315 = vmatpush2.msra.mxu0 0.0
        %316 = vmatprep.subr.mxu0 0.0
        %317 = vmatpush2.msra.mxu0 0.0
        %318 = vmatprep.subr.mxu0 0.0
        %319 = vmatpush2.msra.mxu0 0.0
        %320 = vmatprep.subr.mxu0 0.0
        %321 = vmatpush2.msra.mxu0 0.0
        %322 = vmatprep.subr.mxu0 0.0
        %323 = vmatpush2.msra.mxu0 0.0
        %324 = vmatprep.subr.mxu0 0.0
        %325 = vmatpush2.msra.mxu0 0.0
        %326 = vmatprep.subr.mxu0 0.0
        %327 = vmatpush2.msra.mxu0 0.0
        %328 = vmatprep.subr.mxu0 0.0
        %329 = vmatpush2.msra.mxu0 0.0
        %330 = vmatprep.subr.mxu0 0.0
        %331 = vmatpush2.msra.mxu0 0.0
        %332 = vmatprep.subr.mxu0 0.0
        %333 = vmatpush2.msra.mxu0 0.0
        %334 = vmatprep.subr.mxu0 0.0
        %335 = vmatpush2.msra.mxu0 0.0
        %336 = vmatprep.subr.mxu0 0.0
        %337 = vmatpush2.msra.mxu0 0.0
        %338 = vmatprep.mubr.f32.mxu0 0.0
        %339 = vmatmul.mubr.f32.gmra.mxu0 %v272
        %v340 = vpop.f32.mrf.mxu0
        %v341 = vadd.f32 0.0, %v340
        %v342 = vpop.f32.mrf.mxu0
        %343 = vdwg.mxu0
        %v344 = vadd.f32 %v269, %v341
        %v345 = vmul.f32 %v344, 0.5
        %v346 = vtanh.pop %v345
        %v347 = vmul.f32 %v346, 0.5
        %v348 = vadd.f32 %v347, 0.5
        %v349 = vtanh.pop %v344
        %351 = vrot.lane.b32.xlu0 %v268, 32
        %v352 = vpop.permute.xlu0 %351
        %v354 = vmul.f32 %v348, %v352
        %356 = vrot.lane.b32.xlu0 %v349, 64
        %v357 = vpop.permute.xlu0 %356
        %v359 = vmul.f32 %v348, %v357
        %361 = vrot.lane.b32.xlu0 %v359, 32
        %v362 = vpop.permute.xlu0 %361
        %v364 = vadd.f32 %v354, %v362
        %v365 = vtanh.pop %v364
        %367 = vrot.lane.b32.xlu0 %v365, 64
        %v368 = vpop.permute.xlu0 %367
        %v370 = vmul.f32 %v348, %v368
        %372 = vrot.lane.b32.xlu0 %v370, 32
        %v373 = vpop.permute.xlu0 %372
        %vm375 = vcmask 254976
        %376 = vst.msk [vmem:[#allocation4] sm:$0x3] %vm375, %v373
        %s377 = scalar_lea.vmem %s225, 2 [#allocation5]
        %v378 = vld [vmem:[%s377] sm:$0x3]
        %v379 = vsel %vm270, %v373, 0
        %381 = vmatprep.subr.mxu0 0.0
        %382 = vmatpush1.msra.mxu0 0.0
        %383 = vmatprep.subr.mxu0 0.0
        %384 = vmatpush1.msra.mxu0 0.0
        %385 = vmatprep.subr.mxu0 0.0
        %386 = vmatpush1.msra.mxu0 0.0
        %387 = vmatprep.subr.mxu0 0.0
        %388 = vmatpush1.msra.mxu0 0.0
        %389 = vmatprep.subr.mxu0 0.0
        %390 = vmatpush1.msra.mxu0 0.0
        %391 = vmatprep.subr.mxu0 0.0
        %392 = vmatpush1.msra.mxu0 0.0
        %393 = vmatprep.subr.mxu0 0.0
        %394 = vmatpush1.msra.mxu0 0.0
        %395 = vmatprep.subr.mxu0 0.0
        %396 = vmatpush1.msra.mxu0 0.0
        %397 = vmatprep.subr.mxu0 0.0
        %398 = vmatpush1.msra.mxu0 0.0
        %399 = vmatprep.subr.mxu0 0.0
        %400 = vmatpush1.msra.mxu0 0.0
        %401 = vmatprep.subr.mxu0 0.0
        %402 = vmatpush1.msra.mxu0 0.0
        %403 = vmatprep.subr.mxu0 0.0
        %404 = vmatpush1.msra.mxu0 0.0
        %405 = vmatprep.subr.mxu0 0.0
        %406 = vmatpush1.msra.mxu0 %v266
        %407 = vmatprep.subr.mxu0 0.0
        %408 = vmatpush1.msra.mxu0 %v265
        %409 = vmatprep.subr.mxu0 0.0
        %410 = vmatpush1.msra.mxu0 %v264
        %411 = vmatprep.subr.mxu0 0.0
        %412 = vmatpush1.msra.mxu0 %v263
        %413 = vmatprep.subr.mxu0 0.0
        %414 = vmatpush2.msra.mxu0 0.0
        %415 = vmatprep.subr.mxu0 0.0
        %416 = vmatpush2.msra.mxu0 0.0
        %417 = vmatprep.subr.mxu0 0.0
        %418 = vmatpush2.msra.mxu0 0.0
        %419 = vmatprep.subr.mxu0 0.0
        %420 = vmatpush2.msra.mxu0 0.0
        %421 = vmatprep.subr.mxu0 0.0
        %422 = vmatpush2.msra.mxu0 0.0
        %423 = vmatprep.subr.mxu0 0.0
        %424 = vmatpush2.msra.mxu0 0.0
        %425 = vmatprep.subr.mxu0 0.0
        %426 = vmatpush2.msra.mxu0 0.0
        %427 = vmatprep.subr.mxu0 0.0
        %428 = vmatpush2.msra.mxu0 0.0
        %429 = vmatprep.subr.mxu0 0.0
        %430 = vmatpush2.msra.mxu0 0.0
        %431 = vmatprep.subr.mxu0 0.0
        %432 = vmatpush2.msra.mxu0 0.0
        %433 = vmatprep.subr.mxu0 0.0
        %434 = vmatpush2.msra.mxu0 0.0
        %435 = vmatprep.subr.mxu0 0.0
        %436 = vmatpush2.msra.mxu0 0.0
        %437 = vmatprep.subr.mxu0 0.0
        %438 = vmatpush2.msra.mxu0 0.0
        %439 = vmatprep.subr.mxu0 0.0
        %440 = vmatpush2.msra.mxu0 0.0
        %441 = vmatprep.subr.mxu0 0.0
        %442 = vmatpush2.msra.mxu0 0.0
        %443 = vmatprep.subr.mxu0 0.0
        %444 = vmatpush2.msra.mxu0 0.0
        %445 = vmatprep.mubr.f32.mxu0 0.0
        %446 = vmatmul.mubr.f32.gmra.mxu0 %v379
        %v447 = vpop.f32.mrf.mxu0
        %v448 = vadd.f32 0.0, %v447
        %v449 = vpop.f32.mrf.mxu0
        %450 = vdwg.mxu0
        %v451 = vadd.f32 %v378, %v448
        %v452 = vmul.f32 %v451, 0.5
        %v453 = vtanh.pop %v452
        %v454 = vmul.f32 %v453, 0.5
        %v455 = vadd.f32 %v454, 0.5
        %v456 = vtanh.pop %v451
        %v457 = vmul.f32 %v455, %v364
        %459 = vrot.lane.b32.xlu0 %v456, 64
        %v460 = vpop.permute.xlu0 %459
        %v462 = vmul.f32 %v455, %v460
        %464 = vrot.lane.b32.xlu0 %v462, 32
        %v465 = vpop.permute.xlu0 %464
        %v467 = vadd.f32 %v457, %v465
        %v468 = vtanh.pop %v467
        %470 = vrot.lane.b32.xlu0 %v468, 64
        %v471 = vpop.permute.xlu0 %470
        %v473 = vmul.f32 %v455, %v471
        %475 = vrot.lane.b32.xlu0 %v473, 32
        %v476 = vpop.permute.xlu0 %475
        %s478 = scalar_lea.vmem [#allocation4], 2
        %479 = vst.msk [vmem:[%s478] sm:$0x3] %vm375, %v476
        %s480 = scalar_lea.vmem %s225, 4 [#allocation5]
        %v481 = vld [vmem:[%s480] sm:$0x3]
        %v482 = vsel %vm270, %v476, 0
        %484 = vmatprep.subr.mxu0 0.0
        %485 = vmatpush1.msra.mxu0 0.0
        %486 = vmatprep.subr.mxu0 0.0
        %487 = vmatpush1.msra.mxu0 0.0
        %488 = vmatprep.subr.mxu0 0.0
        %489 = vmatpush1.msra.mxu0 0.0
        %490 = vmatprep.subr.mxu0 0.0
        %491 = vmatpush1.msra.mxu0 0.0
        %492 = vmatprep.subr.mxu0 0.0
        %493 = vmatpush1.msra.mxu0 0.0
        %494 = vmatprep.subr.mxu0 0.0
        %495 = vmatpush1.msra.mxu0 0.0
        %496 = vmatprep.subr.mxu0 0.0
        %497 = vmatpush1.msra.mxu0 0.0
        %498 = vmatprep.subr.mxu0 0.0
        %499 = vmatpush1.msra.mxu0 0.0
        %500 = vmatprep.subr.mxu0 0.0
        %501 = vmatpush1.msra.mxu0 0.0
        %502 = vmatprep.subr.mxu0 0.0
        %503 = vmatpush1.msra.mxu0 0.0
        %504 = vmatprep.subr.mxu0 0.0
        %505 = vmatpush1.msra.mxu0 0.0
        %506 = vmatprep.subr.mxu0 0.0
        %507 = vmatpush1.msra.mxu0 0.0
        %508 = vmatprep.subr.mxu0 0.0
        %509 = vmatpush1.msra.mxu0 %v266
        %510 = vmatprep.subr.mxu0 0.0
        %511 = vmatpush1.msra.mxu0 %v265
        %512 = vmatprep.subr.mxu0 0.0
        %513 = vmatpush1.msra.mxu0 %v264
        %514 = vmatprep.subr.mxu0 0.0
        %515 = vmatpush1.msra.mxu0 %v263
        %516 = vmatprep.subr.mxu0 0.0
        %517 = vmatpush2.msra.mxu0 0.0
        %518 = vmatprep.subr.mxu0 0.0
        %519 = vmatpush2.msra.mxu0 0.0
        %520 = vmatprep.subr.mxu0 0.0
        %521 = vmatpush2.msra.mxu0 0.0
        %522 = vmatprep.subr.mxu0 0.0
        %523 = vmatpush2.msra.mxu0 0.0
        %524 = vmatprep.subr.mxu0 0.0
        %525 = vmatpush2.msra.mxu0 0.0
        %526 = vmatprep.subr.mxu0 0.0
        %527 = vmatpush2.msra.mxu0 0.0
        %528 = vmatprep.subr.mxu0 0.0
        %529 = vmatpush2.msra.mxu0 0.0
        %530 = vmatprep.subr.mxu0 0.0
        %531 = vmatpush2.msra.mxu0 0.0
        %532 = vmatprep.subr.mxu0 0.0
        %533 = vmatpush2.msra.mxu0 0.0
        %534 = vmatprep.subr.mxu0 0.0
        %535 = vmatpush2.msra.mxu0 0.0
        %536 = vmatprep.subr.mxu0 0.0
        %537 = vmatpush2.msra.mxu0 0.0
        %538 = vmatprep.subr.mxu0 0.0
        %539 = vmatpush2.msra.mxu0 0.0
        %540 = vmatprep.subr.mxu0 0.0
        %541 = vmatpush2.msra.mxu0 0.0
        %542 = vmatprep.subr.mxu0 0.0
        %543 = vmatpush2.msra.mxu0 0.0
        %544 = vmatprep.subr.mxu0 0.0
        %545 = vmatpush2.msra.mxu0 0.0
        %546 = vmatprep.subr.mxu0 0.0
        %547 = vmatpush2.msra.mxu0 0.0
        %548 = vmatprep.mubr.f32.mxu0 0.0
        %549 = vmatmul.mubr.f32.gmra.mxu0 %v482
        %v550 = vpop.f32.mrf.mxu0
        %v551 = vadd.f32 0.0, %v550
        %v552 = vpop.f32.mrf.mxu0
        %553 = vdwg.mxu0
        %v554 = vadd.f32 %v481, %v551
        %v555 = vmul.f32 %v554, 0.5
        %v556 = vtanh.pop %v555
        %v557 = vmul.f32 %v556, 0.5
        %v558 = vadd.f32 %v557, 0.5
        %v559 = vtanh.pop %v554
        %v560 = vmul.f32 %v558, %v467
        %562 = vrot.lane.b32.xlu0 %v559, 64
        %v563 = vpop.permute.xlu0 %562
        %v565 = vmul.f32 %v558, %v563
        %567 = vrot.lane.b32.xlu0 %v565, 32
        %v568 = vpop.permute.xlu0 %567
        %v570 = vadd.f32 %v560, %v568
        %v571 = vtanh.pop %v570
        %573 = vrot.lane.b32.xlu0 %v571, 64
        %v574 = vpop.permute.xlu0 %573
        %v576 = vmul.f32 %v558, %v574
        %578 = vrot.lane.b32.xlu0 %v576, 32
        %v579 = vpop.permute.xlu0 %578
        %s581 = scalar_lea.vmem [#allocation4], 4
        %582 = vst.msk [vmem:[%s581] sm:$0x3] %vm375, %v579
        %s583 = scalar_lea.vmem %s225, 6 [#allocation5]
        %v584 = vld [vmem:[%s583] sm:$0x3]
        %v585 = vsel %vm270, %v579, 0
        %587 = vmatprep.subr.mxu0 0.0
        %588 = vmatpush1.msra.mxu0 0.0
        %589 = vmatprep.subr.mxu0 0.0
        %590 = vmatpush1.msra.mxu0 0.0
        %591 = vmatprep.subr.mxu0 0.0
        %592 = vmatpush1.msra.mxu0 0.0
        %593 = vmatprep.subr.mxu0 0.0
        %594 = vmatpush1.msra.mxu0 0.0
        %595 = vmatprep.subr.mxu0 0.0
        %596 = vmatpush1.msra.mxu0 0.0
        %597 = vmatprep.subr.mxu0 0.0
        %598 = vmatpush1.msra.mxu0 0.0
        %599 = vmatprep.subr.mxu0 0.0
        %600 = vmatpush1.msra.mxu0 0.0
        %601 = vmatprep.subr.mxu0 0.0
        %602 = vmatpush1.msra.mxu0 0.0
        %603 = vmatprep.subr.mxu0 0.0
        %604 = vmatpush1.msra.mxu0 0.0
        %605 = vmatprep.subr.mxu0 0.0
        %606 = vmatpush1.msra.mxu0 0.0
        %607 = vmatprep.subr.mxu0 0.0
        %608 = vmatpush1.msra.mxu0 0.0
        %609 = vmatprep.subr.mxu0 0.0
        %610 = vmatpush1.msra.mxu0 0.0
        %611 = vmatprep.subr.mxu0 0.0
        %612 = vmatpush1.msra.mxu0 %v266
        %613 = vmatprep.subr.mxu0 0.0
        %614 = vmatpush1.msra.mxu0 %v265
        %615 = vmatprep.subr.mxu0 0.0
        %616 = vmatpush1.msra.mxu0 %v264
        %617 = vmatprep.subr.mxu0 0.0
        %618 = vmatpush1.msra.mxu0 %v263
        %619 = vmatprep.subr.mxu0 0.0
        %620 = vmatpush2.msra.mxu0 0.0
        %621 = vmatprep.subr.mxu0 0.0
        %622 = vmatpush2.msra.mxu0 0.0
        %623 = vmatprep.subr.mxu0 0.0
        %624 = vmatpush2.msra.mxu0 0.0
        %625 = vmatprep.subr.mxu0 0.0
        %626 = vmatpush2.msra.mxu0 0.0
        %627 = vmatprep.subr.mxu0 0.0
        %628 = vmatpush2.msra.mxu0 0.0
        %629 = vmatprep.subr.mxu0 0.0
        %630 = vmatpush2.msra.mxu0 0.0
        %631 = vmatprep.subr.mxu0 0.0
        %632 = vmatpush2.msra.mxu0 0.0
        %633 = vmatprep.subr.mxu0 0.0
        %634 = vmatpush2.msra.mxu0 0.0
        %635 = vmatprep.subr.mxu0 0.0
        %636 = vmatpush2.msra.mxu0 0.0
        %637 = vmatprep.subr.mxu0 0.0
        %638 = vmatpush2.msra.mxu0 0.0
        %639 = vmatprep.subr.mxu0 0.0
        %640 = vmatpush2.msra.mxu0 0.0
        %641 = vmatprep.subr.mxu0 0.0
        %642 = vmatpush2.msra.mxu0 0.0
        %643 = vmatprep.subr.mxu0 0.0
        %644 = vmatpush2.msra.mxu0 0.0
        %645 = vmatprep.subr.mxu0 0.0
        %646 = vmatpush2.msra.mxu0 0.0
        %647 = vmatprep.subr.mxu0 0.0
        %648 = vmatpush2.msra.mxu0 0.0
        %649 = vmatprep.subr.mxu0 0.0
        %650 = vmatpush2.msra.mxu0 0.0
        %651 = vmatprep.mubr.f32.mxu0 0.0
        %652 = vmatmul.mubr.f32.gmra.mxu0 %v585
        %v653 = vpop.f32.mrf.mxu0
        %v654 = vadd.f32 0.0, %v653
        %v655 = vpop.f32.mrf.mxu0
        %656 = vdwg.mxu0
        %v657 = vadd.f32 %v584, %v654
        %v658 = vmul.f32 %v657, 0.5
        %v659 = vtanh.pop %v658
        %v660 = vmul.f32 %v659, 0.5
        %v661 = vadd.f32 %v660, 0.5
        %v662 = vtanh.pop %v657
        %v663 = vmul.f32 %v661, %v570
        %665 = vrot.lane.b32.xlu0 %v662, 64
        %v666 = vpop.permute.xlu0 %665
        %v668 = vmul.f32 %v661, %v666
        %670 = vrot.lane.b32.xlu0 %v668, 32
        %v671 = vpop.permute.xlu0 %670
        %v673 = vadd.f32 %v663, %v671
        %v674 = vtanh.pop %v673
        %676 = vrot.lane.b32.xlu0 %v674, 64
        %v677 = vpop.permute.xlu0 %676
        %v679 = vmul.f32 %v661, %v677
        %681 = vrot.lane.b32.xlu0 %v679, 32
        %v682 = vpop.permute.xlu0 %681
        %s684 = scalar_lea.vmem [#allocation4], 6
        %685 = vst.msk [vmem:[%s684] sm:$0x3] %vm375, %v682
        %s686 = scalar_lea.vmem %s225, 8 [#allocation5]
        %v687 = vld [vmem:[%s686] sm:$0x3]
        %v688 = vsel %vm270, %v682, 0
        %690 = vmatprep.subr.mxu0 0.0
        %691 = vmatpush1.msra.mxu0 0.0
        %692 = vmatprep.subr.mxu0 0.0
        %693 = vmatpush1.msra.mxu0 0.0
        %694 = vmatprep.subr.mxu0 0.0
        %695 = vmatpush1.msra.mxu0 0.0
        %696 = vmatprep.subr.mxu0 0.0
        %697 = vmatpush1.msra.mxu0 0.0
        %698 = vmatprep.subr.mxu0 0.0
        %699 = vmatpush1.msra.mxu0 0.0
        %700 = vmatprep.subr.mxu0 0.0
        %701 = vmatpush1.msra.mxu0 0.0
        %702 = vmatprep.subr.mxu0 0.0
        %703 = vmatpush1.msra.mxu0 0.0
        %704 = vmatprep.subr.mxu0 0.0
        %705 = vmatpush1.msra.mxu0 0.0
        %706 = vmatprep.subr.mxu0 0.0
        %707 = vmatpush1.msra.mxu0 0.0
        %708 = vmatprep.subr.mxu0 0.0
        %709 = vmatpush1.msra.mxu0 0.0
        %710 = vmatprep.subr.mxu0 0.0
        %711 = vmatpush1.msra.mxu0 0.0
        %712 = vmatprep.subr.mxu0 0.0
        %713 = vmatpush1.msra.mxu0 0.0
        %714 = vmatprep.subr.mxu0 0.0
        %715 = vmatpush1.msra.mxu0 %v266
        %716 = vmatprep.subr.mxu0 0.0
        %717 = vmatpush1.msra.mxu0 %v265
        %718 = vmatprep.subr.mxu0 0.0
        %719 = vmatpush1.msra.mxu0 %v264
        %720 = vmatprep.subr.mxu0 0.0
        %721 = vmatpush1.msra.mxu0 %v263
        %722 = vmatprep.subr.mxu0 0.0
        %723 = vmatpush2.msra.mxu0 0.0
        %724 = vmatprep.subr.mxu0 0.0
        %725 = vmatpush2.msra.mxu0 0.0
        %726 = vmatprep.subr.mxu0 0.0
        %727 = vmatpush2.msra.mxu0 0.0
        %728 = vmatprep.subr.mxu0 0.0
        %729 = vmatpush2.msra.mxu0 0.0
        %730 = vmatprep.subr.mxu0 0.0
        %731 = vmatpush2.msra.mxu0 0.0
        %732 = vmatprep.subr.mxu0 0.0
        %733 = vmatpush2.msra.mxu0 0.0
        %734 = vmatprep.subr.mxu0 0.0
        %735 = vmatpush2.msra.mxu0 0.0
        %736 = vmatprep.subr.mxu0 0.0
        %737 = vmatpush2.msra.mxu0 0.0
        %738 = vmatprep.subr.mxu0 0.0
        %739 = vmatpush2.msra.mxu0 0.0
        %740 = vmatprep.subr.mxu0 0.0
        %741 = vmatpush2.msra.mxu0 0.0
        %742 = vmatprep.subr.mxu0 0.0
        %743 = vmatpush2.msra.mxu0 0.0
        %744 = vmatprep.subr.mxu0 0.0
        %745 = vmatpush2.msra.mxu0 0.0
        %746 = vmatprep.subr.mxu0 0.0
        %747 = vmatpush2.msra.mxu0 0.0
        %748 = vmatprep.subr.mxu0 0.0
        %749 = vmatpush2.msra.mxu0 0.0
        %750 = vmatprep.subr.mxu0 0.0
        %751 = vmatpush2.msra.mxu0 0.0
        %752 = vmatprep.subr.mxu0 0.0
        %753 = vmatpush2.msra.mxu0 0.0
        %754 = vmatprep.mubr.f32.mxu0 0.0
        %755 = vmatmul.mubr.f32.gmra.mxu0 %v688
        %v756 = vpop.f32.mrf.mxu0
        %v757 = vadd.f32 0.0, %v756
        %v758 = vpop.f32.mrf.mxu0
        %759 = vdwg.mxu0
        %v760 = vadd.f32 %v687, %v757
        %v761 = vmul.f32 %v760, 0.5
        %v762 = vtanh.pop %v761
        %v763 = vmul.f32 %v762, 0.5
        %v764 = vadd.f32 %v763, 0.5
        %v765 = vtanh.pop %v760
        %v766 = vmul.f32 %v764, %v673
        %768 = vrot.lane.b32.xlu0 %v765, 64
        %v769 = vpop.permute.xlu0 %768
        %v771 = vmul.f32 %v764, %v769
        %773 = vrot.lane.b32.xlu0 %v771, 32
        %v774 = vpop.permute.xlu0 %773
        %v776 = vadd.f32 %v766, %v774
        %v777 = vtanh.pop %v776
        %779 = vrot.lane.b32.xlu0 %v777, 64
        %v780 = vpop.permute.xlu0 %779
        %v782 = vmul.f32 %v764, %v780
        %784 = vrot.lane.b32.xlu0 %v782, 32
        %v785 = vpop.permute.xlu0 %784
        %s787 = scalar_lea.vmem [#allocation4], 8
        %788 = vst.msk [vmem:[%s787] sm:$0x3] %vm375, %v785
        %s789 = scalar_lea.vmem %s225, 10 [#allocation5]
        %v790 = vld [vmem:[%s789] sm:$0x3]
        %v791 = vsel %vm270, %v785, 0
        %793 = vmatprep.subr.mxu0 0.0
        %794 = vmatpush1.msra.mxu0 0.0
        %795 = vmatprep.subr.mxu0 0.0
        %796 = vmatpush1.msra.mxu0 0.0
        %797 = vmatprep.subr.mxu0 0.0
        %798 = vmatpush1.msra.mxu0 0.0
        %799 = vmatprep.subr.mxu0 0.0
        %800 = vmatpush1.msra.mxu0 0.0
        %801 = vmatprep.subr.mxu0 0.0
        %802 = vmatpush1.msra.mxu0 0.0
        %803 = vmatprep.subr.mxu0 0.0
        %804 = vmatpush1.msra.mxu0 0.0
        %805 = vmatprep.subr.mxu0 0.0
        %806 = vmatpush1.msra.mxu0 0.0
        %807 = vmatprep.subr.mxu0 0.0
        %808 = vmatpush1.msra.mxu0 0.0
        %809 = vmatprep.subr.mxu0 0.0
        %810 = vmatpush1.msra.mxu0 0.0
        %811 = vmatprep.subr.mxu0 0.0
        %812 = vmatpush1.msra.mxu0 0.0
        %813 = vmatprep.subr.mxu0 0.0
        %814 = vmatpush1.msra.mxu0 0.0
        %815 = vmatprep.subr.mxu0 0.0
        %816 = vmatpush1.msra.mxu0 0.0
        %817 = vmatprep.subr.mxu0 0.0
        %818 = vmatpush1.msra.mxu0 %v266
        %819 = vmatprep.subr.mxu0 0.0
        %820 = vmatpush1.msra.mxu0 %v265
        %821 = vmatprep.subr.mxu0 0.0
        %822 = vmatpush1.msra.mxu0 %v264
        %823 = vmatprep.subr.mxu0 0.0
        %824 = vmatpush1.msra.mxu0 %v263
        %825 = vmatprep.subr.mxu0 0.0
        %826 = vmatpush2.msra.mxu0 0.0
        %827 = vmatprep.subr.mxu0 0.0
        %828 = vmatpush2.msra.mxu0 0.0
        %829 = vmatprep.subr.mxu0 0.0
        %830 = vmatpush2.msra.mxu0 0.0
        %831 = vmatprep.subr.mxu0 0.0
        %832 = vmatpush2.msra.mxu0 0.0
        %833 = vmatprep.subr.mxu0 0.0
        %834 = vmatpush2.msra.mxu0 0.0
        %835 = vmatprep.subr.mxu0 0.0
        %836 = vmatpush2.msra.mxu0 0.0
        %837 = vmatprep.subr.mxu0 0.0
        %838 = vmatpush2.msra.mxu0 0.0
        %839 = vmatprep.subr.mxu0 0.0
        %840 = vmatpush2.msra.mxu0 0.0
        %841 = vmatprep.subr.mxu0 0.0
        %842 = vmatpush2.msra.mxu0 0.0
        %843 = vmatprep.subr.mxu0 0.0
        %844 = vmatpush2.msra.mxu0 0.0
        %845 = vmatprep.subr.mxu0 0.0
        %846 = vmatpush2.msra.mxu0 0.0
        %847 = vmatprep.subr.mxu0 0.0
        %848 = vmatpush2.msra.mxu0 0.0
        %849 = vmatprep.subr.mxu0 0.0
        %850 = vmatpush2.msra.mxu0 0.0
        %851 = vmatprep.subr.mxu0 0.0
        %852 = vmatpush2.msra.mxu0 0.0
        %853 = vmatprep.subr.mxu0 0.0
        %854 = vmatpush2.msra.mxu0 0.0
        %855 = vmatprep.subr.mxu0 0.0
        %856 = vmatpush2.msra.mxu0 0.0
        %857 = vmatprep.mubr.f32.mxu0 0.0
        %858 = vmatmul.mubr.f32.gmra.mxu0 %v791
        %v859 = vpop.f32.mrf.mxu0
        %v860 = vadd.f32 0.0, %v859
        %v861 = vpop.f32.mrf.mxu0
        %862 = vdwg.mxu0
        %v863 = vadd.f32 %v790, %v860
        %v864 = vmul.f32 %v863, 0.5
        %v865 = vtanh.pop %v864
        %v866 = vmul.f32 %v865, 0.5
        %v867 = vadd.f32 %v866, 0.5
        %v868 = vtanh.pop %v863
        %v869 = vmul.f32 %v867, %v776
        %871 = vrot.lane.b32.xlu0 %v868, 64
        %v872 = vpop.permute.xlu0 %871
        %v874 = vmul.f32 %v867, %v872
        %876 = vrot.lane.b32.xlu0 %v874, 32
        %v877 = vpop.permute.xlu0 %876
        %v879 = vadd.f32 %v869, %v877
        %v880 = vtanh.pop %v879
        %882 = vrot.lane.b32.xlu0 %v880, 64
        %v883 = vpop.permute.xlu0 %882
        %v885 = vmul.f32 %v867, %v883
        %887 = vrot.lane.b32.xlu0 %v885, 32
        %v888 = vpop.permute.xlu0 %887
        %s890 = scalar_lea.vmem [#allocation4], 10
        %891 = vst.msk [vmem:[%s890] sm:$0x3] %vm375, %v888
        %s892 = scalar_lea.vmem %s225, 12 [#allocation5]
        %v893 = vld [vmem:[%s892] sm:$0x3]
        %v894 = vsel %vm270, %v888, 0
        %896 = vmatprep.subr.mxu0 0.0
        %897 = vmatpush1.msra.mxu0 0.0
        %898 = vmatprep.subr.mxu0 0.0
        %899 = vmatpush1.msra.mxu0 0.0
        %900 = vmatprep.subr.mxu0 0.0
        %901 = vmatpush1.msra.mxu0 0.0
        %902 = vmatprep.subr.mxu0 0.0
        %903 = vmatpush1.msra.mxu0 0.0
        %904 = vmatprep.subr.mxu0 0.0
        %905 = vmatpush1.msra.mxu0 0.0
        %906 = vmatprep.subr.mxu0 0.0
        %907 = vmatpush1.msra.mxu0 0.0
        %908 = vmatprep.subr.mxu0 0.0
        %909 = vmatpush1.msra.mxu0 0.0
        %910 = vmatprep.subr.mxu0 0.0
        %911 = vmatpush1.msra.mxu0 0.0
        %912 = vmatprep.subr.mxu0 0.0
        %913 = vmatpush1.msra.mxu0 0.0
        %914 = vmatprep.subr.mxu0 0.0
        %915 = vmatpush1.msra.mxu0 0.0
        %916 = vmatprep.subr.mxu0 0.0
        %917 = vmatpush1.msra.mxu0 0.0
        %918 = vmatprep.subr.mxu0 0.0
        %919 = vmatpush1.msra.mxu0 0.0
        %920 = vmatprep.subr.mxu0 0.0
        %921 = vmatpush1.msra.mxu0 %v266
        %922 = vmatprep.subr.mxu0 0.0
        %923 = vmatpush1.msra.mxu0 %v265
        %924 = vmatprep.subr.mxu0 0.0
        %925 = vmatpush1.msra.mxu0 %v264
        %926 = vmatprep.subr.mxu0 0.0
        %927 = vmatpush1.msra.mxu0 %v263
        %928 = vmatprep.subr.mxu0 0.0
        %929 = vmatpush2.msra.mxu0 0.0
        %930 = vmatprep.subr.mxu0 0.0
        %931 = vmatpush2.msra.mxu0 0.0
        %932 = vmatprep.subr.mxu0 0.0
        %933 = vmatpush2.msra.mxu0 0.0
        %934 = vmatprep.subr.mxu0 0.0
        %935 = vmatpush2.msra.mxu0 0.0
        %936 = vmatprep.subr.mxu0 0.0
        %937 = vmatpush2.msra.mxu0 0.0
        %938 = vmatprep.subr.mxu0 0.0
        %939 = vmatpush2.msra.mxu0 0.0
        %940 = vmatprep.subr.mxu0 0.0
        %941 = vmatpush2.msra.mxu0 0.0
        %942 = vmatprep.subr.mxu0 0.0
        %943 = vmatpush2.msra.mxu0 0.0
        %944 = vmatprep.subr.mxu0 0.0
        %945 = vmatpush2.msra.mxu0 0.0
        %946 = vmatprep.subr.mxu0 0.0
        %947 = vmatpush2.msra.mxu0 0.0
        %948 = vmatprep.subr.mxu0 0.0
        %949 = vmatpush2.msra.mxu0 0.0
        %950 = vmatprep.subr.mxu0 0.0
        %951 = vmatpush2.msra.mxu0 0.0
        %952 = vmatprep.subr.mxu0 0.0
        %953 = vmatpush2.msra.mxu0 0.0
        %954 = vmatprep.subr.mxu0 0.0
        %955 = vmatpush2.msra.mxu0 0.0
        %956 = vmatprep.subr.mxu0 0.0
        %957 = vmatpush2.msra.mxu0 0.0
        %958 = vmatprep.subr.mxu0 0.0
        %959 = vmatpush2.msra.mxu0 0.0
        %960 = vmatprep.mubr.f32.mxu0 0.0
        %961 = vmatmul.mubr.f32.gmra.mxu0 %v894
        %v962 = vpop.f32.mrf.mxu0
        %v963 = vadd.f32 0.0, %v962
        %v964 = vpop.f32.mrf.mxu0
        %965 = vdwg.mxu0
        %v966 = vadd.f32 %v893, %v963
        %v967 = vmul.f32 %v966, 0.5
        %v968 = vtanh.pop %v967
        %v969 = vmul.f32 %v968, 0.5
        %v970 = vadd.f32 %v969, 0.5
        %v971 = vtanh.pop %v966
        %v972 = vmul.f32 %v970, %v879
        %974 = vrot.lane.b32.xlu0 %v971, 64
        %v975 = vpop.permute.xlu0 %974
        %v977 = vmul.f32 %v970, %v975
        %979 = vrot.lane.b32.xlu0 %v977, 32
        %v980 = vpop.permute.xlu0 %979
        %v982 = vadd.f32 %v972, %v980
        %v983 = vtanh.pop %v982
        %985 = vrot.lane.b32.xlu0 %v983, 64
        %v986 = vpop.permute.xlu0 %985
        %v988 = vmul.f32 %v970, %v986
        %990 = vrot.lane.b32.xlu0 %v988, 32
        %v991 = vpop.permute.xlu0 %990
        %s993 = scalar_lea.vmem [#allocation4], 12
        %994 = vst.msk [vmem:[%s993] sm:$0x3] %vm375, %v991
        %s995 = scalar_lea.vmem %s225, 14 [#allocation5]
        %v996 = vld [vmem:[%s995] sm:$0x3]
        %v997 = vsel %vm270, %v991, 0
        %999 = vmatprep.subr.mxu0 0.0
        %1000 = vmatpush1.msra.mxu0 0.0
        %1001 = vmatprep.subr.mxu0 0.0
        %1002 = vmatpush1.msra.mxu0 0.0
        %1003 = vmatprep.subr.mxu0 0.0
        %1004 = vmatpush1.msra.mxu0 0.0
        %1005 = vmatprep.subr.mxu0 0.0
        %1006 = vmatpush1.msra.mxu0 0.0
        %1007 = vmatprep.subr.mxu0 0.0
        %1008 = vmatpush1.msra.mxu0 0.0
        %1009 = vmatprep.subr.mxu0 0.0
        %1010 = vmatpush1.msra.mxu0 0.0
        %1011 = vmatprep.subr.mxu0 0.0
        %1012 = vmatpush1.msra.mxu0 0.0
        %1013 = vmatprep.subr.mxu0 0.0
        %1014 = vmatpush1.msra.mxu0 0.0
        %1015 = vmatprep.subr.mxu0 0.0
        %1016 = vmatpush1.msra.mxu0 0.0
        %1017 = vmatprep.subr.mxu0 0.0
        %1018 = vmatpush1.msra.mxu0 0.0
        %1019 = vmatprep.subr.mxu0 0.0
        %1020 = vmatpush1.msra.mxu0 0.0
        %1021 = vmatprep.subr.mxu0 0.0
        %1022 = vmatpush1.msra.mxu0 0.0
        %1023 = vmatprep.subr.mxu0 0.0
        %1024 = vmatpush1.msra.mxu0 %v266
        %1025 = vmatprep.subr.mxu0 0.0
        %1026 = vmatpush1.msra.mxu0 %v265
        %1027 = vmatprep.subr.mxu0 0.0
        %1028 = vmatpush1.msra.mxu0 %v264
        %1029 = vmatprep.subr.mxu0 0.0
        %1030 = vmatpush1.msra.mxu0 %v263
        %1031 = vmatprep.subr.mxu0 0.0
        %1032 = vmatpush2.msra.mxu0 0.0
        %1033 = vmatprep.subr.mxu0 0.0
        %1034 = vmatpush2.msra.mxu0 0.0
        %1035 = vmatprep.subr.mxu0 0.0
        %1036 = vmatpush2.msra.mxu0 0.0
        %1037 = vmatprep.subr.mxu0 0.0
        %1038 = vmatpush2.msra.mxu0 0.0
        %1039 = vmatprep.subr.mxu0 0.0
        %1040 = vmatpush2.msra.mxu0 0.0
        %1041 = vmatprep.subr.mxu0 0.0
        %1042 = vmatpush2.msra.mxu0 0.0
        %1043 = vmatprep.subr.mxu0 0.0
        %1044 = vmatpush2.msra.mxu0 0.0
        %1045 = vmatprep.subr.mxu0 0.0
        %1046 = vmatpush2.msra.mxu0 0.0
        %1047 = vmatprep.subr.mxu0 0.0
        %1048 = vmatpush2.msra.mxu0 0.0
        %1049 = vmatprep.subr.mxu0 0.0
        %1050 = vmatpush2.msra.mxu0 0.0
        %1051 = vmatprep.subr.mxu0 0.0
        %1052 = vmatpush2.msra.mxu0 0.0
        %1053 = vmatprep.subr.mxu0 0.0
        %1054 = vmatpush2.msra.mxu0 0.0
        %1055 = vmatprep.subr.mxu0 0.0
        %1056 = vmatpush2.msra.mxu0 0.0
        %1057 = vmatprep.subr.mxu0 0.0
        %1058 = vmatpush2.msra.mxu0 0.0
        %1059 = vmatprep.subr.mxu0 0.0
        %1060 = vmatpush2.msra.mxu0 0.0
        %1061 = vmatprep.subr.mxu0 0.0
        %1062 = vmatpush2.msra.mxu0 0.0
        %1063 = vmatprep.mubr.f32.mxu0 0.0
        %1064 = vmatmul.mubr.f32.gmra.mxu0 %v997
        %v1065 = vpop.f32.mrf.mxu0
        %v1066 = vadd.f32 0.0, %v1065
        %v1067 = vpop.f32.mrf.mxu0
        %1068 = vdwg.mxu0
        %v1069 = vadd.f32 %v996, %v1066
        %v1070 = vmul.f32 %v1069, 0.5
        %v1071 = vtanh.pop %v1070
        %v1072 = vmul.f32 %v1071, 0.5
        %v1073 = vadd.f32 %v1072, 0.5
        %v1074 = vtanh.pop %v1069
        %v1075 = vmul.f32 %v1073, %v982
        %1077 = vrot.lane.b32.xlu0 %v1074, 64
        %v1078 = vpop.permute.xlu0 %1077
        %v1080 = vmul.f32 %v1073, %v1078
        %1082 = vrot.lane.b32.xlu0 %v1080, 32
        %v1083 = vpop.permute.xlu0 %1082
        %v1085 = vadd.f32 %v1075, %v1083
        %v1086 = vtanh.pop %v1085
        %1088 = vrot.lane.b32.xlu0 %v1086, 64
        %v1089 = vpop.permute.xlu0 %1088
        %v1091 = vmul.f32 %v1073, %v1089
        %1093 = vrot.lane.b32.xlu0 %v1091, 32
        %v1094 = vpop.permute.xlu0 %1093
        %s1096 = scalar_lea.vmem [#allocation4], 14
        %1097 = vst.msk [vmem:[%s1096] sm:$0x3] %vm375, %v1094
        %1098 = vst.msk [vmem:[#allocation2] sm:$0x3] %vm375, %v1094
        %1100 = vrot.lane.b32.xlu0 %v1085, 96
        %v1101 = vpop.permute.xlu0 %1100
        %1103 = vst.msk [vmem:[#allocation3] sm:$0x3] %vm375, %v1101
        %v1104 = vld [vmem:[#allocation4] sm:$0x3]
        %v1105 = vld [vmem:[#allocation4 + $0x2] sm:$0x3]
        %v1106 = vld [vmem:[#allocation4 + $0x4] sm:$0x3]
        %v1107 = vld [vmem:[#allocation4 + $0x6] sm:$0x3]
        %v1108 = vld [vmem:[#allocation4 + $0x8] sm:$0x3]
        %v1109 = vld [vmem:[#allocation4 + $0xa] sm:$0x3]
        %v1110 = vld [vmem:[#allocation4 + $0xc] sm:$0x3]
        %v1111 = vld [vmem:[#allocation4 + $0xe] sm:$0x3]
        %v1112 = vcombine.low %v1104, %v1106
        %v1114 = vunpack.c.l.s4 1983009808
        %v1115 = vunpack.c.0.s8 %v1114
        %v1116 = vlaneseq
        %v1117 = vshrl.u32 %v1116, 7
        %v1118 = vsub.s32 %v1115, %v1117
        %v1119 = vrot.slane %v1112, %v1118
        %v1120 = vcombine.low %v1105, %v1107
        %v1122 = vunpack.c.l.s4 1983009808
        %v1123 = vunpack.c.0.s8 %v1122
        %v1124 = vlaneseq
        %v1125 = vshrl.u32 %v1124, 7
        %v1126 = vsub.s32 %v1123, %v1125
        %v1127 = vrot.slane %v1120, %v1126
        %v1128 = vcombine.low %v1108, %v1110
        %v1130 = vunpack.c.l.s4 1983009808
        %v1131 = vunpack.c.0.s8 %v1130
        %v1132 = vlaneseq
        %v1133 = vshrl.u32 %v1132, 7
        %v1134 = vsub.s32 %v1131, %v1133
        %v1135 = vrot.slane %v1128, %v1134
        %v1136 = vcombine.low %v1109, %v1111
        %v1138 = vunpack.c.l.s4 1983009808
        %v1139 = vunpack.c.0.s8 %v1138
        %v1140 = vlaneseq
        %v1141 = vshrl.u32 %v1140, 7
        %v1142 = vsub.s32 %v1139, %v1141
        %v1143 = vrot.slane %v1136, %v1142
        %v1144 = vcombine.low %v1119, %v1127
        %v1146 = vunpack.c.l.s4 1934713408
        %v1147 = vunpack.c.0.s8 %v1146
        %v1148 = vlaneseq
        %v1149 = vshrl.u32 %v1148, 7
        %v1150 = vsub.s32 %v1147, %v1149
        %v1151 = vrot.slane %v1144, %v1150
        %v1152 = vcombine.low %v1135, %v1143
        %v1154 = vunpack.c.l.s4 1934713408
        %v1155 = vunpack.c.0.s8 %v1154
        %v1156 = vlaneseq
        %v1157 = vshrl.u32 %v1156, 7
        %v1158 = vsub.s32 %v1155, %v1157
        %v1159 = vrot.slane %v1152, %v1158
        %v1160 = vcombine.low %v1151, %v1159
        %v1161 = vcombine.high %v1151, %v1159
        %1162 = vst.msk [vmem:[%s249] sm:$0xff] %vm270, %v1160
        %1163 = vst.msk [vmem:[%s249 + $0x8] sm:$0xff] %vm270, %v1161
        %p1164 = scmp.eq.s32.totalorder %s29, 1
        // Predicated region
        $region41: #{tpu_custom_call.1} parent=27 // pred_check
          %p1165 = pneg %p1164
        $region42: #{tpu_custom_call.1} parent=27 // pred_check_branch
          %1167 = sbr.rel (%p1165) target = $region44
        $region43: #{tpu_custom_call.1} parent=27 // pred_region
          %1168 = vst.msk [vmem:[#allocation11] sm:$0x3] %vm375, %v1094
          %1169 = vst.msk [vmem:[#allocation13] sm:$0x3] %vm375, %v1101
        $region44: #{tpu_custom_call.1} parent=27 // pred_fallthru
          _
        %s1170 = sand.u32 %s95, 1
        %s1171 = scalar_lea.sflag [#allocation7], %s1170
        %s1172 = sand.u32 %s95, 1
        %s1173 = smul.addr %s1172, 16
        %s1174 = scalar_lea.vmem [#allocation10], %s1173
        // Predicated region
        $region45: #{tpu_custom_call.1} parent=27 // pred_check
          %p1175 = pneg %p105
        $region46: #{tpu_custom_call.1} parent=27 // pred_check_branch
          %1177 = sbr.rel (%p1175) target = $region48
        $region47: #{tpu_custom_call.1} parent=27 // pred_region
          %s1178 = smul.u32 2, %s28
          %s1180 = ssub.s32 256, 256
          %1181 = vsyncadd %s1171, %s1180
          %s1182 = smul.addr %s1178, 2
          %s1183 = sadd.s32 %s29, %s1182
          %s1184 = smul.addr %s1183, 128
          %s1185 = scalar_lea.hbm %s2, %s1184
          %s1186 = sshll.u32 %s1174, 4
          %s1187 = int_to_ptr.vmem [resolvable:$true] %s1186
          %1192 = dma.vmem_to_hbm [thread:$0]  %s1187, 256, %s1185, %s1171, 128, 256, 8
        $region48: #{tpu_custom_call.1} parent=27 // pred_fallthru
          _
        // Predicated region
        $region49: #{tpu_custom_call.1} parent=27 // pred_check
          %p1193 = pneg %p131
        $region50: #{tpu_custom_call.1} parent=27 // pred_check_branch
          %1195 = sbr.rel (%p1193) target = $region52
        $region51: #{tpu_custom_call.1} parent=27 // pred_region
          %s1197 = ssub.s32 32, 32
          %1198 = vsyncadd [#allocation12], %s1197
          %s1199 = smul.addr %s28, 32
          %s1200 = scalar_lea.hbm %s3, %s1199
          %s1202 = sshll.u32 [#allocation11], 4
          %s1203 = int_to_ptr.vmem [resolvable:$true] %s1202
          %1205 = dma.vmem_to_hbm [thread:$0]  %s1203, 32, %s1200, [#allocation12]
        $region52: #{tpu_custom_call.1} parent=27 // pred_fallthru
          _
        // Predicated region
        $region53: #{tpu_custom_call.1} parent=27 // pred_check
          %p1206 = pneg %p157
        $region54: #{tpu_custom_call.1} parent=27 // pred_check_branch
          %1208 = sbr.rel (%p1206) target = $region56
        $region55: #{tpu_custom_call.1} parent=27 // pred_region
          %s1210 = ssub.s32 32, 32
          %1211 = vsyncadd [#allocation12], %s1210
          %s1212 = smul.addr %s28, 32
          %s1213 = scalar_lea.hbm %s4, %s1212
          %s1215 = sshll.u32 [#allocation13], 4
          %s1216 = int_to_ptr.vmem [resolvable:$true] %s1215
          %1218 = dma.vmem_to_hbm [thread:$0]  %s1216, 32, %s1213, [#allocation12]
        $region56: #{tpu_custom_call.1} parent=27 // pred_fallthru
          _
        // Predicated region
        $region57: #{tpu_custom_call.1} parent=27 // pred_check
          %p1219 = pneg %p131
        $region58: #{tpu_custom_call.1} parent=27 // pred_check_branch
          %1221 = sbr.rel (%p1219) target = $region60
        $region59: #{tpu_custom_call.1} parent=27 // pred_region
          %1222 = dma.done [#allocation12], 32
        $region60: #{tpu_custom_call.1} parent=27 // pred_fallthru
          _
        // Predicated region
        $region61: #{tpu_custom_call.1} parent=27 // pred_check
          %p1223 = pneg %p157
        $region62: #{tpu_custom_call.1} parent=27 // pred_check_branch
          %1225 = sbr.rel (%p1223) target = $region64
        $region63: #{tpu_custom_call.1} parent=27 // pred_region
          %1226 = dma.done [#allocation12], 32
        $region64: #{tpu_custom_call.1} parent=27 // pred_fallthru
          _
      $region28: #{tpu_custom_call.1} parent=5 // pred_fallthru
        _
      %p1227 = scmp.le.s32.totalorder 2, %s19
      // Predicated region
      $region65: #{tpu_custom_call.1} parent=5 // pred_check
        %p1228 = pneg %p1227
      $region66: #{tpu_custom_call.1} parent=5 // pred_check_branch
        %1230 = sbr.rel (%p1228) target = $region68
      $region67: #{tpu_custom_call.1} parent=5 // pred_region
        %s1231 = ssub.s32 %s19, 2
        // Predicated region
        $region69: #{tpu_custom_call.1} parent=67 // pred_check
          %p1232 = pneg %p111
        $region70: #{tpu_custom_call.1} parent=67 // pred_check_branch
          %1234 = sbr.rel (%p1232) target = $region72
        $region71: #{tpu_custom_call.1} parent=67 // pred_region
          %s1235 = sand.u32 %s96, 1
          %s1236 = scalar_lea.sflag [#allocation7], %s1235
          %s1237 = sand.u32 %s96, 1
          %s1238 = smul.addr %s1237, 16
          %s1239 = scalar_lea.vmem [#allocation10], %s1238
          %1240 = dma.done %s1236, 256
        $region72: #{tpu_custom_call.1} parent=67 // pred_fallthru
          _
      $region68: #{tpu_custom_call.1} parent=5 // pred_fallthru
        _
    $region6: #{tpu_custom_call.1} parent=1 // loop_footer
      %s23 = sadd.s32 1, %s19
    $region7: #{tpu_custom_call.1} parent=1 // loop_footer_branch
      %18 = sbr.rel target = $region3
    $region8: #{tpu_custom_call.1} parent=1 // loop_exit
      _
    %1241 = vsyncpa [#allocation6], 1
    %s1242 = scalar_lea.sflag [#allocation6], 1
    %1243 = vsyncpa %s1242, 1
    %1244 = vsyncpa [#allocation9], 1
    %1245 = vsyncpa [#allocation7], 1
    %s1246 = scalar_lea.sflag [#allocation7], 1
    %1247 = vsyncpa %s1246, 1
    %1248 = vsyncpa [#allocation12], 1

</llo_original>
